<compile_context>
chip_gen: v7x
topology: tpu7x:2x2x1
jax: 0.10.0
libtpu: 0.0.40
codegen_flags: <defaults>
</compile_context>

<pallas_src>
import math

import jax
import jax.numpy as jnp
from jax.experimental import pallas as pl
from jax.experimental.pallas import tpu as pltpu


# ----------------------------------------------------------------------------
# helpers
# ----------------------------------------------------------------------------
def _pair(v):
    return (v, v) if isinstance(v, int) else tuple(v)


def _round_up(x, m):
    return ((x + m - 1) // m) * m


# ----------------------------------------------------------------------------
# Pallas kernel: VPU multiply + K-reduction, L (spatial) on the lane axis
# ----------------------------------------------------------------------------
def _lc_kernel(cols_ref, w_ref, b_ref, o_ref):
    # cols_ref: (K, B, TL)   w_ref: (K, outC, TL)   b_ref: (outC, TL)
    # o_ref   : (B, outC, TL)
    K, B, TL = cols_ref.shape
    outC = w_ref.shape[1]

    # Seed the f32 accumulator with the bias (broadcast over batch) so the
    # epilogue is just a dtype cast + store.
    bias = b_ref[...].astype(jnp.float32)                     # (outC, TL)
    acc0 = jnp.broadcast_to(bias[None, :, :], (B, outC, TL))  # (B, outC, TL)

    def body(k, acc):
        c_k = cols_ref[k].astype(jnp.float32)                 # (B, TL)    lane-dense
        w_k = w_ref[k].astype(jnp.float32)                    # (outC, TL) lane-dense
        return acc + c_k[:, None, :] * w_k[None, :, :]

    acc = jax.lax.fori_loop(0, K, body, acc0, unroll=(K <= 64))
    o_ref[...] = acc.astype(o_ref.dtype)


# ----------------------------------------------------------------------------
# tiling / VMEM sizing
# ----------------------------------------------------------------------------
_BLOCK_VMEM_BUDGET = 24 * 1024 * 1024   # target bytes for the double-buffered blocks


def _pick_tile_l(L, K, B, outC, in_itemsize, out_itemsize,
                 budget=_BLOCK_VMEM_BUDGET):
    if L <= 128:
        return L                                   # block must equal the full dim
    Bp = _round_up(B, 8)                           # sublane padding of cols block
    outCp = _round_up(outC, 8)                     # sublane padding of w/bias/out
    # double-buffered VMEM bytes per unit of tile_l (cols + weight + bias + out)
    per_l = 2 * (in_itemsize * (K * Bp + K * outCp + outCp)
                 + out_itemsize * B * outCp)
    t = max(budget // max(per_l, 1), 128)
    # keep the in-kernel working set (acc + one cols row + one weight row)
    # roughly inside the 64-vreg register file to avoid spills
    vreg_cap = (160 * 1024) // max(4 * (B * outC + B + outC), 1)
    t = max(min(t, vreg_cap), 128)
    # keep >= 2 grid steps so v7x's two TensorCores both get work
    t = min(t, max(128, (pl.cdiv(L, 2) // 128) * 128))
    return (t // 128) * 128


def _vmem_limit_bytes(block_working_bytes):
    cap = None
    try:
        cap = getattr(pltpu.get_tpu_info(), "vmem_capacity_bytes", None)
    except Exception:
        cap = None
    if not cap:
        cap = 64 * 1024 * 1024       # conservative: v7x physical VMEM per core
    want = max(block_working_bytes + (8 << 20), 32 << 20)
    return int(min(cap * 3 // 4, want))


# ----------------------------------------------------------------------------
# host-side layout plumbing (activations per call, parameters once at init)
# ----------------------------------------------------------------------------
def _unfold_kbl(x, kernel_size, padding, stride, dilation):
    """im2col producing (K, B, L) directly, K = inC*kH*kW (F.unfold ordering),
    L = outH*outW."""
    kH, kW = kernel_size
    pH, pW = padding
    sH, sW = stride
    dH, dW = dilation
    B, C, H, W = x.shape
    outH = (H + 2 * pH - dH * (kH - 1) - 1) // sH + 1
    outW = (W + 2 * pW - dW * (kW - 1) - 1) // sW + 1
    x_pad = jnp.pad(x, ((0, 0), (0, 0), (pH, pH), (pW, pW)))
    patches = []
    for kh in range(kH):
        for kw in range(kW):
            h0, w0 = kh * dH, kw * dW
            patches.append(
                x_pad[:, :, h0:h0 + (outH - 1) * sH + 1:sH,
                            w0:w0 + (outW - 1) * sW + 1:sW])   # (B,C,outH,outW)
    cols = jnp.stack(patches, axis=0)                 # (kH*kW, B, C, outH, outW)
    cols = jnp.transpose(cols, (2, 0, 1, 3, 4))       # (C, kH*kW, B, outH, outW)
    cols = cols.reshape(C * kH * kW, B, outH * outW)  # (K, B, L)
    return cols, outH, outW


def pack_weight(weight):
    """(outH,outW,outC,inC,kH,kW) -> kernel layout (K, outC, L), L on lanes."""
    outH, outW, outC, inC, kH, kW = weight.shape
    L, K = outH * outW, inC * kH * kW
    return jnp.transpose(weight.reshape(L, outC, K), (2, 1, 0))   # (K, outC, L)


def pack_bias(bias, outC, outH, outW, dtype):
    if bias is None:
        return jnp.zeros((outC, outH * outW), dtype=dtype)
    return bias.reshape(outC, outH * outW)            # free reshape, no transpose


# ----------------------------------------------------------------------------
# pallas_call wrapper (operands already in kernel layout)
# ----------------------------------------------------------------------------
def conv2d_local_packed(cols_kbl, w_kol, bias_ol, out_dtype, *, tile_l=None):
    K, B, L = cols_kbl.shape
    outC = w_kol.shape[1]
    in_itemsize = max(jnp.dtype(cols_kbl.dtype).itemsize,
                      jnp.dtype(w_kol.dtype).itemsize)
    out_itemsize = jnp.dtype(out_dtype).itemsize

    if L <= 128:
        tile_l = L
    elif tile_l is None:
        tile_l = _pick_tile_l(L, K, B, outC, in_itemsize, out_itemsize)
    else:
        tile_l = max(128, min((int(tile_l) // 128) * 128, _round_up(L, 128)))

    grid = pl.cdiv(L, tile_l)

    Bp, outCp = _round_up(B, 8), _round_up(outC, 8)
    working = 2 * tile_l * (in_itemsize * (K * Bp + K * outCp + outCp)
                            + out_itemsize * B * outCp)

    cost = pl.CostEstimate(
        flops=int(2 * B * K * outC * L),
        transcendentals=0,
        bytes_accessed=int(cols_kbl.nbytes + w_kol.nbytes + bias_ol.nbytes
                           + B * outC * L * out_itemsize),
    )

    out_bol = pl.pallas_call(
        _lc_kernel,
        out_shape=jax.ShapeDtypeStruct((B, outC, L), out_dtype),
        grid_spec=pltpu.PrefetchScalarGridSpec(
            num_scalar_prefetch=0,
            grid=(grid,),
            in_specs=[
                pl.BlockSpec((K, B, tile_l), lambda i: (0, 0, i)),
                pl.BlockSpec((K, outC, tile_l), lambda i: (0, 0, i)),
                pl.BlockSpec((outC, tile_l), lambda i: (0, i)),
            ],
            out_specs=pl.BlockSpec((B, outC, tile_l), lambda i: (0, 0, i)),
        ),
        compiler_params=pltpu.CompilerParams(
            dimension_semantics=("parallel",),
            vmem_limit_bytes=_vmem_limit_bytes(working),
        ),
        cost_estimate=cost,
    )(cols_kbl, w_kol, bias_ol)
    return out_bol                                    # (B, outC, L) == flat NCHW


def conv2d_local(x, weight, bias=None, *, stride=(1, 1), padding=(0, 0),
                 dilation=(1, 1), tile_l=None):
    """Functional entry taking PyTorch-layout weight/bias (packs on the fly)."""
    stride, padding, dilation = _pair(stride), _pair(padding), _pair(dilation)
    outH, outW, outC, inC, kH, kW = weight.shape
    cols, oh, ow = _unfold_kbl(x, (kH, kW), padding, stride, dilation)
    assert (oh, ow) == (outH, outW)
    w_kol = pack_weight(weight)
    b_ol = pack_bias(bias, outC, outH, outW, x.dtype)
    out = conv2d_local_packed(cols, w_kol, b_ol, x.dtype, tile_l=tile_l)
    return out.reshape(x.shape[0], outC, outH, outW)


# ----------------------------------------------------------------------------
# module wrapper (mirrors the PyTorch Conv2dLocal forward pass)
# ----------------------------------------------------------------------------
class Conv2dLocalJAX:
    def __init__(self, in_height, in_width, in_channels, out_channels,
                 kernel_size, stride=1, padding=0, bias=True, dilation=1,
                 key=None, dtype=jnp.float32, param_dtype=None):
        if key is None:
            key = jax.random.PRNGKey(0)
        self.kernel_size = _pair(kernel_size)
        self.stride = _pair(stride)
        self.padding = _pair(padding)
        self.dilation = _pair(dilation)
        kH, kW = self.kernel_size
        self.out_channels = out_channels
        self.out_height = int(math.floor(
            (in_height + 2 * self.padding[0] - self.dilation[0] * (kH - 1) - 1)
            / self.stride[0] + 1))
        self.out_width = int(math.floor(
            (in_width + 2 * self.padding[1] - self.dilation[1] * (kW - 1) - 1)
            / self.stride[1] + 1))

        n = in_channels * kH * kW
        stdv = 1.0 / math.sqrt(n)
        kw_key, kb_key = jax.random.split(key)
        self.weight = jax.random.uniform(
            kw_key,
            (self.out_height, self.out_width, out_channels, in_channels, kH, kW),
            dtype=dtype, minval=-stdv, maxval=stdv)
        self.bias = (jax.random.uniform(
            kb_key, (out_channels, self.out_height, self.out_width),
            dtype=dtype, minval=-stdv, maxval=stdv) if bias else None)

        # Pre-pack ONCE into the kernel's L-last layout: no per-forward HBM
        # transpose pass over the (huge) locally-connected weight tensor.
        # param_dtype=jnp.bfloat16 halves weight HBM traffic on v6e/v7x (the
        # kernel always accumulates in f32); default keeps exact f32 parity.
        pdt = param_dtype if param_dtype is not None else dtype
        self._w_kol = pack_weight(self.weight).astype(pdt)
        self._b_ol = pack_bias(self.bias, out_channels, self.out_height,
                               self.out_width, dtype).astype(pdt)

    def __call__(self, x):
        cols, oh, ow = _unfold_kbl(x, self.kernel_size, self.padding,
                                   self.stride, self.dilation)
        out = conv2d_local_packed(cols, self._w_kol, self._b_ol, x.dtype)
        return out.reshape(x.shape[0], self.out_channels, oh, ow)


# ----------------------------------------------------------------------------
# pure-JAX reference (PyTorch conv2d_local semantics) for validation
# ----------------------------------------------------------------------------
def _reference(x, weight, bias, stride, padding, dilation):
    outH, outW, outC, inC, kH, kW = weight.shape
    cols, _, _ = _unfold_kbl(x, (kH, kW), padding, stride, dilation)   # (K,B,L)
    cols_blk = jnp.transpose(cols, (1, 2, 0))                          # (B,L,K)
    w = jnp.transpose(weight.reshape(outH * outW, outC, inC * kH * kW),
                      (0, 2, 1))                                       # (L,K,outC)
    out = jnp.einsum("blk,lko->blo", cols_blk, w)                      # (B,L,outC)
    out = out.reshape(x.shape[0], outH, outW, outC).transpose(0, 3, 1, 2)
    if bias is not None:
        out = out + bias[None]
    return out


if __name__ == "__main__":
    key = jax.random.PRNGKey(0)
    k_x, k_mod = jax.random.split(key)

    B, C, H, W = 2, 4, 16, 16
    outC, ksize, stride, padding = 8, 3, 1, 1

    x = jax.random.normal(k_x, (B, C, H, W), dtype=jnp.float32)
    mod = Conv2dLocalJAX(H, W, C, outC, ksize, stride=stride, padding=padding,
                         bias=True, key=k_mod)

    out = jax.block_until_ready(mod(x))

    ref = _reference(x, mod.weight, mod.bias, mod.stride, mod.padding,
                     mod.dilation)
    assert out.shape == (B, outC, mod.out_height, mod.out_width)
    err = float(jnp.max(jnp.abs(out - ref)))
    assert jnp.allclose(out, ref, atol=1e-4, rtol=1e-4), err

    print("KERNEL_OK")
</pallas_src>

<mosaic_0001>
module attributes {stable_mosaic.version = 11 : i64} {
  func.func @_lc_kernel(%arg0: i32, %arg1: memref<36x2x128xf32, #tpu.memory_space<vmem>>, %arg2: memref<36x8x128xf32, #tpu.memory_space<vmem>>, %arg3: memref<8x128xf32, #tpu.memory_space<vmem>>, %arg4: memref<2x8x128xf32, #tpu.memory_space<vmem>>) attributes {dimension_semantics = [#tpu.dimension_semantics<parallel>], iteration_bounds = array<i64: 2>, scalar_prefetch = 0 : i64, scratch_operands = 0 : i64, tpu.core_type = #tpu.core_type<tc>, window_params = [{transform_indices = @transform_0, window_bounds = array<i64: 36, 2, 128>}, {transform_indices = @transform_1, window_bounds = array<i64: 36, 8, 128>}, {transform_indices = @transform_2, window_bounds = array<i64: 8, 128>}, {transform_indices = @transform_3, window_bounds = array<i64: 2, 8, 128>}]} {
    %c0 = arith.constant 0 : index
    %c0_0 = arith.constant 0 : index
    %0 = vector.load %arg3[%c0, %c0_0] : memref<8x128xf32, #tpu.memory_space<vmem>>, vector<8x128xf32>
    %1 = vector.shape_cast %0 : vector<8x128xf32> to vector<1x8x128xf32>
    %2 = vector.shape_cast %1 : vector<1x8x128xf32> to vector<1x8x128xf32>
    %3 = vector.broadcast %2 : vector<1x8x128xf32> to vector<2x8x128xf32>
    %c0_i32 = arith.constant 0 : i32
    %4 = arith.index_cast %c0_i32 : i32 to index
    %c0_1 = arith.constant 0 : index
    %c0_2 = arith.constant 0 : index
    %5 = vector.load %arg1[%4, %c0_1, %c0_2] : memref<36x2x128xf32, #tpu.memory_space<vmem>>, vector<1x2x128xf32>
    %6 = vector.shape_cast %5 : vector<1x2x128xf32> to vector<2x128xf32>
    %7 = arith.index_cast %c0_i32 : i32 to index
    %c0_3 = arith.constant 0 : index
    %c0_4 = arith.constant 0 : index
    %8 = vector.load %arg2[%7, %c0_3, %c0_4] : memref<36x8x128xf32, #tpu.memory_space<vmem>>, vector<1x8x128xf32>
    %9 = vector.shape_cast %8 : vector<1x8x128xf32> to vector<8x128xf32>
    %10 = vector.shape_cast %6 : vector<2x128xf32> to vector<2x1x128xf32>
    %11 = vector.shape_cast %9 : vector<8x128xf32> to vector<1x8x128xf32>
    %12 = vector.broadcast %10 : vector<2x1x128xf32> to vector<2x8x128xf32>
    %13 = vector.broadcast %11 : vector<1x8x128xf32> to vector<2x8x128xf32>
    %14 = arith.mulf %12, %13 : vector<2x8x128xf32>
    %15 = arith.addf %3, %14 : vector<2x8x128xf32>
    %c1_i32 = arith.constant 1 : i32
    %16 = arith.index_cast %c1_i32 : i32 to index
    %c0_5 = arith.constant 0 : index
    %c0_6 = arith.constant 0 : index
    %17 = vector.load %arg1[%16, %c0_5, %c0_6] : memref<36x2x128xf32, #tpu.memory_space<vmem>>, vector<1x2x128xf32>
    %18 = vector.shape_cast %17 : vector<1x2x128xf32> to vector<2x128xf32>
    %19 = arith.index_cast %c1_i32 : i32 to index
    %c0_7 = arith.constant 0 : index
    %c0_8 = arith.constant 0 : index
    %20 = vector.load %arg2[%19, %c0_7, %c0_8] : memref<36x8x128xf32, #tpu.memory_space<vmem>>, vector<1x8x128xf32>
    %21 = vector.shape_cast %20 : vector<1x8x128xf32> to vector<8x128xf32>
    %22 = vector.shape_cast %18 : vector<2x128xf32> to vector<2x1x128xf32>
    %23 = vector.shape_cast %21 : vector<8x128xf32> to vector<1x8x128xf32>
    %24 = vector.broadcast %22 : vector<2x1x128xf32> to vector<2x8x128xf32>
    %25 = vector.broadcast %23 : vector<1x8x128xf32> to vector<2x8x128xf32>
    %26 = arith.mulf %24, %25 : vector<2x8x128xf32>
    %27 = arith.addf %15, %26 : vector<2x8x128xf32>
    %c2_i32 = arith.constant 2 : i32
    %28 = arith.index_cast %c2_i32 : i32 to index
    %c0_9 = arith.constant 0 : index
    %c0_10 = arith.constant 0 : index
    %29 = vector.load %arg1[%28, %c0_9, %c0_10] : memref<36x2x128xf32, #tpu.memory_space<vmem>>, vector<1x2x128xf32>
    %30 = vector.shape_cast %29 : vector<1x2x128xf32> to vector<2x128xf32>
    %31 = arith.index_cast %c2_i32 : i32 to index
    %c0_11 = arith.constant 0 : index
    %c0_12 = arith.constant 0 : index
    %32 = vector.load %arg2[%31, %c0_11, %c0_12] : memref<36x8x128xf32, #tpu.memory_space<vmem>>, vector<1x8x128xf32>
    %33 = vector.shape_cast %32 : vector<1x8x128xf32> to vector<8x128xf32>
    %34 = vector.shape_cast %30 : vector<2x128xf32> to vector<2x1x128xf32>
    %35 = vector.shape_cast %33 : vector<8x128xf32> to vector<1x8x128xf32>
    %36 = vector.broadcast %34 : vector<2x1x128xf32> to vector<2x8x128xf32>
    %37 = vector.broadcast %35 : vector<1x8x128xf32> to vector<2x8x128xf32>
    %38 = arith.mulf %36, %37 : vector<2x8x128xf32>
    %39 = arith.addf %27, %38 : vector<2x8x128xf32>
    %c3_i32 = arith.constant 3 : i32
    %40 = arith.index_cast %c3_i32 : i32 to index
    %c0_13 = arith.constant 0 : index
    %c0_14 = arith.constant 0 : index
    %41 = vector.load %arg1[%40, %c0_13, %c0_14] : memref<36x2x128xf32, #tpu.memory_space<vmem>>, vector<1x2x128xf32>
    %42 = vector.shape_cast %41 : vector<1x2x128xf32> to vector<2x128xf32>
    %43 = arith.index_cast %c3_i32 : i32 to index
    %c0_15 = arith.constant 0 : index
    %c0_16 = arith.constant 0 : index
    %44 = vector.load %arg2[%43, %c0_15, %c0_16] : memref<36x8x128xf32, #tpu.memory_space<vmem>>, vector<1x8x128xf32>
    %45 = vector.shape_cast %44 : vector<1x8x128xf32> to vector<8x128xf32>
    %46 = vector.shape_cast %42 : vector<2x128xf32> to vector<2x1x128xf32>
    %47 = vector.shape_cast %45 : vector<8x128xf32> to vector<1x8x128xf32>
    %48 = vector.broadcast %46 : vector<2x1x128xf32> to vector<2x8x128xf32>
    %49 = vector.broadcast %47 : vector<1x8x128xf32> to vector<2x8x128xf32>
    %50 = arith.mulf %48, %49 : vector<2x8x128xf32>
    %51 = arith.addf %39, %50 : vector<2x8x128xf32>
    %c4_i32 = arith.constant 4 : i32
    %52 = arith.index_cast %c4_i32 : i32 to index
    %c0_17 = arith.constant 0 : index
    %c0_18 = arith.constant 0 : index
    %53 = vector.load %arg1[%52, %c0_17, %c0_18] : memref<36x2x128xf32, #tpu.memory_space<vmem>>, vector<1x2x128xf32>
    %54 = vector.shape_cast %53 : vector<1x2x128xf32> to vector<2x128xf32>
    %55 = arith.index_cast %c4_i32 : i32 to index
    %c0_19 = arith.constant 0 : index
    %c0_20 = arith.constant 0 : index
    %56 = vector.load %arg2[%55, %c0_19, %c0_20] : memref<36x8x128xf32, #tpu.memory_space<vmem>>, vector<1x8x128xf32>
    %57 = vector.shape_cast %56 : vector<1x8x128xf32> to vector<8x128xf32>
    %58 = vector.shape_cast %54 : vector<2x128xf32> to vector<2x1x128xf32>
    %59 = vector.shape_cast %57 : vector<8x128xf32> to vector<1x8x128xf32>
    %60 = vector.broadcast %58 : vector<2x1x128xf32> to vector<2x8x128xf32>
    %61 = vector.broadcast %59 : vector<1x8x128xf32> to vector<2x8x128xf32>
    %62 = arith.mulf %60, %61 : vector<2x8x128xf32>
    %63 = arith.addf %51, %62 : vector<2x8x128xf32>
    %c5_i32 = arith.constant 5 : i32
    %64 = arith.index_cast %c5_i32 : i32 to index
    %c0_21 = arith.constant 0 : index
    %c0_22 = arith.constant 0 : index
    %65 = vector.load %arg1[%64, %c0_21, %c0_22] : memref<36x2x128xf32, #tpu.memory_space<vmem>>, vector<1x2x128xf32>
    %66 = vector.shape_cast %65 : vector<1x2x128xf32> to vector<2x128xf32>
    %67 = arith.index_cast %c5_i32 : i32 to index
    %c0_23 = arith.constant 0 : index
    %c0_24 = arith.constant 0 : index
    %68 = vector.load %arg2[%67, %c0_23, %c0_24] : memref<36x8x128xf32, #tpu.memory_space<vmem>>, vector<1x8x128xf32>
    %69 = vector.shape_cast %68 : vector<1x8x128xf32> to vector<8x128xf32>
    %70 = vector.shape_cast %66 : vector<2x128xf32> to vector<2x1x128xf32>
    %71 = vector.shape_cast %69 : vector<8x128xf32> to vector<1x8x128xf32>
    %72 = vector.broadcast %70 : vector<2x1x128xf32> to vector<2x8x128xf32>
    %73 = vector.broadcast %71 : vector<1x8x128xf32> to vector<2x8x128xf32>
    %74 = arith.mulf %72, %73 : vector<2x8x128xf32>
    %75 = arith.addf %63, %74 : vector<2x8x128xf32>
    %c6_i32 = arith.constant 6 : i32
    %76 = arith.index_cast %c6_i32 : i32 to index
    %c0_25 = arith.constant 0 : index
    %c0_26 = arith.constant 0 : index
    %77 = vector.load %arg1[%76, %c0_25, %c0_26] : memref<36x2x128xf32, #tpu.memory_space<vmem>>, vector<1x2x128xf32>
    %78 = vector.shape_cast %77 : vector<1x2x128xf32> to vector<2x128xf32>
    %79 = arith.index_cast %c6_i32 : i32 to index
    %c0_27 = arith.constant 0 : index
    %c0_28 = arith.constant 0 : index
    %80 = vector.load %arg2[%79, %c0_27, %c0_28] : memref<36x8x128xf32, #tpu.memory_space<vmem>>, vector<1x8x128xf32>
    %81 = vector.shape_cast %80 : vector<1x8x128xf32> to vector<8x128xf32>
    %82 = vector.shape_cast %78 : vector<2x128xf32> to vector<2x1x128xf32>
    %83 = vector.shape_cast %81 : vector<8x128xf32> to vector<1x8x128xf32>
    %84 = vector.broadcast %82 : vector<2x1x128xf32> to vector<2x8x128xf32>
    %85 = vector.broadcast %83 : vector<1x8x128xf32> to vector<2x8x128xf32>
    %86 = arith.mulf %84, %85 : vector<2x8x128xf32>
    %87 = arith.addf %75, %86 : vector<2x8x128xf32>
    %c7_i32 = arith.constant 7 : i32
    %88 = arith.index_cast %c7_i32 : i32 to index
    %c0_29 = arith.constant 0 : index
    %c0_30 = arith.constant 0 : index
    %89 = vector.load %arg1[%88, %c0_29, %c0_30] : memref<36x2x128xf32, #tpu.memory_space<vmem>>, vector<1x2x128xf32>
    %90 = vector.shape_cast %89 : vector<1x2x128xf32> to vector<2x128xf32>
    %91 = arith.index_cast %c7_i32 : i32 to index
    %c0_31 = arith.constant 0 : index
    %c0_32 = arith.constant 0 : index
    %92 = vector.load %arg2[%91, %c0_31, %c0_32] : memref<36x8x128xf32, #tpu.memory_space<vmem>>, vector<1x8x128xf32>
    %93 = vector.shape_cast %92 : vector<1x8x128xf32> to vector<8x128xf32>
    %94 = vector.shape_cast %90 : vector<2x128xf32> to vector<2x1x128xf32>
    %95 = vector.shape_cast %93 : vector<8x128xf32> to vector<1x8x128xf32>
    %96 = vector.broadcast %94 : vector<2x1x128xf32> to vector<2x8x128xf32>
    %97 = vector.broadcast %95 : vector<1x8x128xf32> to vector<2x8x128xf32>
    %98 = arith.mulf %96, %97 : vector<2x8x128xf32>
    %99 = arith.addf %87, %98 : vector<2x8x128xf32>
    %c8_i32 = arith.constant 8 : i32
    %100 = arith.index_cast %c8_i32 : i32 to index
    %c0_33 = arith.constant 0 : index
    %c0_34 = arith.constant 0 : index
    %101 = vector.load %arg1[%100, %c0_33, %c0_34] : memref<36x2x128xf32, #tpu.memory_space<vmem>>, vector<1x2x128xf32>
    %102 = vector.shape_cast %101 : vector<1x2x128xf32> to vector<2x128xf32>
    %103 = arith.index_cast %c8_i32 : i32 to index
    %c0_35 = arith.constant 0 : index
    %c0_36 = arith.constant 0 : index
    %104 = vector.load %arg2[%103, %c0_35, %c0_36] : memref<36x8x128xf32, #tpu.memory_space<vmem>>, vector<1x8x128xf32>
    %105 = vector.shape_cast %104 : vector<1x8x128xf32> to vector<8x128xf32>
    %106 = vector.shape_cast %102 : vector<2x128xf32> to vector<2x1x128xf32>
    %107 = vector.shape_cast %105 : vector<8x128xf32> to vector<1x8x128xf32>
    %108 = vector.broadcast %106 : vector<2x1x128xf32> to vector<2x8x128xf32>
    %109 = vector.broadcast %107 : vector<1x8x128xf32> to vector<2x8x128xf32>
    %110 = arith.mulf %108, %109 : vector<2x8x128xf32>
    %111 = arith.addf %99, %110 : vector<2x8x128xf32>
    %c9_i32 = arith.constant 9 : i32
    %112 = arith.index_cast %c9_i32 : i32 to index
    %c0_37 = arith.constant 0 : index
    %c0_38 = arith.constant 0 : index
    %113 = vector.load %arg1[%112, %c0_37, %c0_38] : memref<36x2x128xf32, #tpu.memory_space<vmem>>, vector<1x2x128xf32>
    %114 = vector.shape_cast %113 : vector<1x2x128xf32> to vector<2x128xf32>
    %115 = arith.index_cast %c9_i32 : i32 to index
    %c0_39 = arith.constant 0 : index
    %c0_40 = arith.constant 0 : index
    %116 = vector.load %arg2[%115, %c0_39, %c0_40] : memref<36x8x128xf32, #tpu.memory_space<vmem>>, vector<1x8x128xf32>
    %117 = vector.shape_cast %116 : vector<1x8x128xf32> to vector<8x128xf32>
    %118 = vector.shape_cast %114 : vector<2x128xf32> to vector<2x1x128xf32>
    %119 = vector.shape_cast %117 : vector<8x128xf32> to vector<1x8x128xf32>
    %120 = vector.broadcast %118 : vector<2x1x128xf32> to vector<2x8x128xf32>
    %121 = vector.broadcast %119 : vector<1x8x128xf32> to vector<2x8x128xf32>
    %122 = arith.mulf %120, %121 : vector<2x8x128xf32>
    %123 = arith.addf %111, %122 : vector<2x8x128xf32>
    %c10_i32 = arith.constant 10 : i32
    %124 = arith.index_cast %c10_i32 : i32 to index
    %c0_41 = arith.constant 0 : index
    %c0_42 = arith.constant 0 : index
    %125 = vector.load %arg1[%124, %c0_41, %c0_42] : memref<36x2x128xf32, #tpu.memory_space<vmem>>, vector<1x2x128xf32>
    %126 = vector.shape_cast %125 : vector<1x2x128xf32> to vector<2x128xf32>
    %127 = arith.index_cast %c10_i32 : i32 to index
    %c0_43 = arith.constant 0 : index
    %c0_44 = arith.constant 0 : index
    %128 = vector.load %arg2[%127, %c0_43, %c0_44] : memref<36x8x128xf32, #tpu.memory_space<vmem>>, vector<1x8x128xf32>
    %129 = vector.shape_cast %128 : vector<1x8x128xf32> to vector<8x128xf32>
    %130 = vector.shape_cast %126 : vector<2x128xf32> to vector<2x1x128xf32>
    %131 = vector.shape_cast %129 : vector<8x128xf32> to vector<1x8x128xf32>
    %132 = vector.broadcast %130 : vector<2x1x128xf32> to vector<2x8x128xf32>
    %133 = vector.broadcast %131 : vector<1x8x128xf32> to vector<2x8x128xf32>
    %134 = arith.mulf %132, %133 : vector<2x8x128xf32>
    %135 = arith.addf %123, %134 : vector<2x8x128xf32>
    %c11_i32 = arith.constant 11 : i32
    %136 = arith.index_cast %c11_i32 : i32 to index
    %c0_45 = arith.constant 0 : index
    %c0_46 = arith.constant 0 : index
    %137 = vector.load %arg1[%136, %c0_45, %c0_46] : memref<36x2x128xf32, #tpu.memory_space<vmem>>, vector<1x2x128xf32>
    %138 = vector.shape_cast %137 : vector<1x2x128xf32> to vector<2x128xf32>
    %139 = arith.index_cast %c11_i32 : i32 to index
    %c0_47 = arith.constant 0 : index
    %c0_48 = arith.constant 0 : index
    %140 = vector.load %arg2[%139, %c0_47, %c0_48] : memref<36x8x128xf32, #tpu.memory_space<vmem>>, vector<1x8x128xf32>
    %141 = vector.shape_cast %140 : vector<1x8x128xf32> to vector<8x128xf32>
    %142 = vector.shape_cast %138 : vector<2x128xf32> to vector<2x1x128xf32>
    %143 = vector.shape_cast %141 : vector<8x128xf32> to vector<1x8x128xf32>
    %144 = vector.broadcast %142 : vector<2x1x128xf32> to vector<2x8x128xf32>
    %145 = vector.broadcast %143 : vector<1x8x128xf32> to vector<2x8x128xf32>
    %146 = arith.mulf %144, %145 : vector<2x8x128xf32>
    %147 = arith.addf %135, %146 : vector<2x8x128xf32>
    %c12_i32 = arith.constant 12 : i32
    %148 = arith.index_cast %c12_i32 : i32 to index
    %c0_49 = arith.constant 0 : index
    %c0_50 = arith.constant 0 : index
    %149 = vector.load %arg1[%148, %c0_49, %c0_50] : memref<36x2x128xf32, #tpu.memory_space<vmem>>, vector<1x2x128xf32>
    %150 = vector.shape_cast %149 : vector<1x2x128xf32> to vector<2x128xf32>
    %151 = arith.index_cast %c12_i32 : i32 to index
    %c0_51 = arith.constant 0 : index
    %c0_52 = arith.constant 0 : index
    %152 = vector.load %arg2[%151, %c0_51, %c0_52] : memref<36x8x128xf32, #tpu.memory_space<vmem>>, vector<1x8x128xf32>
    %153 = vector.shape_cast %152 : vector<1x8x128xf32> to vector<8x128xf32>
    %154 = vector.shape_cast %150 : vector<2x128xf32> to vector<2x1x128xf32>
    %155 = vector.shape_cast %153 : vector<8x128xf32> to vector<1x8x128xf32>
    %156 = vector.broadcast %154 : vector<2x1x128xf32> to vector<2x8x128xf32>
    %157 = vector.broadcast %155 : vector<1x8x128xf32> to vector<2x8x128xf32>
    %158 = arith.mulf %156, %157 : vector<2x8x128xf32>
    %159 = arith.addf %147, %158 : vector<2x8x128xf32>
    %c13_i32 = arith.constant 13 : i32
    %160 = arith.index_cast %c13_i32 : i32 to index
    %c0_53 = arith.constant 0 : index
    %c0_54 = arith.constant 0 : index
    %161 = vector.load %arg1[%160, %c0_53, %c0_54] : memref<36x2x128xf32, #tpu.memory_space<vmem>>, vector<1x2x128xf32>
    %162 = vector.shape_cast %161 : vector<1x2x128xf32> to vector<2x128xf32>
    %163 = arith.index_cast %c13_i32 : i32 to index
    %c0_55 = arith.constant 0 : index
    %c0_56 = arith.constant 0 : index
    %164 = vector.load %arg2[%163, %c0_55, %c0_56] : memref<36x8x128xf32, #tpu.memory_space<vmem>>, vector<1x8x128xf32>
    %165 = vector.shape_cast %164 : vector<1x8x128xf32> to vector<8x128xf32>
    %166 = vector.shape_cast %162 : vector<2x128xf32> to vector<2x1x128xf32>
    %167 = vector.shape_cast %165 : vector<8x128xf32> to vector<1x8x128xf32>
    %168 = vector.broadcast %166 : vector<2x1x128xf32> to vector<2x8x128xf32>
    %169 = vector.broadcast %167 : vector<1x8x128xf32> to vector<2x8x128xf32>
    %170 = arith.mulf %168, %169 : vector<2x8x128xf32>
    %171 = arith.addf %159, %170 : vector<2x8x128xf32>
    %c14_i32 = arith.constant 14 : i32
    %172 = arith.index_cast %c14_i32 : i32 to index
    %c0_57 = arith.constant 0 : index
    %c0_58 = arith.constant 0 : index
    %173 = vector.load %arg1[%172, %c0_57, %c0_58] : memref<36x2x128xf32, #tpu.memory_space<vmem>>, vector<1x2x128xf32>
    %174 = vector.shape_cast %173 : vector<1x2x128xf32> to vector<2x128xf32>
    %175 = arith.index_cast %c14_i32 : i32 to index
    %c0_59 = arith.constant 0 : index
    %c0_60 = arith.constant 0 : index
    %176 = vector.load %arg2[%175, %c0_59, %c0_60] : memref<36x8x128xf32, #tpu.memory_space<vmem>>, vector<1x8x128xf32>
    %177 = vector.shape_cast %176 : vector<1x8x128xf32> to vector<8x128xf32>
    %178 = vector.shape_cast %174 : vector<2x128xf32> to vector<2x1x128xf32>
    %179 = vector.shape_cast %177 : vector<8x128xf32> to vector<1x8x128xf32>
    %180 = vector.broadcast %178 : vector<2x1x128xf32> to vector<2x8x128xf32>
    %181 = vector.broadcast %179 : vector<1x8x128xf32> to vector<2x8x128xf32>
    %182 = arith.mulf %180, %181 : vector<2x8x128xf32>
    %183 = arith.addf %171, %182 : vector<2x8x128xf32>
    %c15_i32 = arith.constant 15 : i32
    %184 = arith.index_cast %c15_i32 : i32 to index
    %c0_61 = arith.constant 0 : index
    %c0_62 = arith.constant 0 : index
    %185 = vector.load %arg1[%184, %c0_61, %c0_62] : memref<36x2x128xf32, #tpu.memory_space<vmem>>, vector<1x2x128xf32>
    %186 = vector.shape_cast %185 : vector<1x2x128xf32> to vector<2x128xf32>
    %187 = arith.index_cast %c15_i32 : i32 to index
    %c0_63 = arith.constant 0 : index
    %c0_64 = arith.constant 0 : index
    %188 = vector.load %arg2[%187, %c0_63, %c0_64] : memref<36x8x128xf32, #tpu.memory_space<vmem>>, vector<1x8x128xf32>
    %189 = vector.shape_cast %188 : vector<1x8x128xf32> to vector<8x128xf32>
    %190 = vector.shape_cast %186 : vector<2x128xf32> to vector<2x1x128xf32>
    %191 = vector.shape_cast %189 : vector<8x128xf32> to vector<1x8x128xf32>
    %192 = vector.broadcast %190 : vector<2x1x128xf32> to vector<2x8x128xf32>
    %193 = vector.broadcast %191 : vector<1x8x128xf32> to vector<2x8x128xf32>
    %194 = arith.mulf %192, %193 : vector<2x8x128xf32>
    %195 = arith.addf %183, %194 : vector<2x8x128xf32>
    %c16_i32 = arith.constant 16 : i32
    %196 = arith.index_cast %c16_i32 : i32 to index
    %c0_65 = arith.constant 0 : index
    %c0_66 = arith.constant 0 : index
    %197 = vector.load %arg1[%196, %c0_65, %c0_66] : memref<36x2x128xf32, #tpu.memory_space<vmem>>, vector<1x2x128xf32>
    %198 = vector.shape_cast %197 : vector<1x2x128xf32> to vector<2x128xf32>
    %199 = arith.index_cast %c16_i32 : i32 to index
    %c0_67 = arith.constant 0 : index
    %c0_68 = arith.constant 0 : index
    %200 = vector.load %arg2[%199, %c0_67, %c0_68] : memref<36x8x128xf32, #tpu.memory_space<vmem>>, vector<1x8x128xf32>
    %201 = vector.shape_cast %200 : vector<1x8x128xf32> to vector<8x128xf32>
    %202 = vector.shape_cast %198 : vector<2x128xf32> to vector<2x1x128xf32>
    %203 = vector.shape_cast %201 : vector<8x128xf32> to vector<1x8x128xf32>
    %204 = vector.broadcast %202 : vector<2x1x128xf32> to vector<2x8x128xf32>
    %205 = vector.broadcast %203 : vector<1x8x128xf32> to vector<2x8x128xf32>
    %206 = arith.mulf %204, %205 : vector<2x8x128xf32>
    %207 = arith.addf %195, %206 : vector<2x8x128xf32>
    %c17_i32 = arith.constant 17 : i32
    %208 = arith.index_cast %c17_i32 : i32 to index
    %c0_69 = arith.constant 0 : index
    %c0_70 = arith.constant 0 : index
    %209 = vector.load %arg1[%208, %c0_69, %c0_70] : memref<36x2x128xf32, #tpu.memory_space<vmem>>, vector<1x2x128xf32>
    %210 = vector.shape_cast %209 : vector<1x2x128xf32> to vector<2x128xf32>
    %211 = arith.index_cast %c17_i32 : i32 to index
    %c0_71 = arith.constant 0 : index
    %c0_72 = arith.constant 0 : index
    %212 = vector.load %arg2[%211, %c0_71, %c0_72] : memref<36x8x128xf32, #tpu.memory_space<vmem>>, vector<1x8x128xf32>
    %213 = vector.shape_cast %212 : vector<1x8x128xf32> to vector<8x128xf32>
    %214 = vector.shape_cast %210 : vector<2x128xf32> to vector<2x1x128xf32>
    %215 = vector.shape_cast %213 : vector<8x128xf32> to vector<1x8x128xf32>
    %216 = vector.broadcast %214 : vector<2x1x128xf32> to vector<2x8x128xf32>
    %217 = vector.broadcast %215 : vector<1x8x128xf32> to vector<2x8x128xf32>
    %218 = arith.mulf %216, %217 : vector<2x8x128xf32>
    %219 = arith.addf %207, %218 : vector<2x8x128xf32>
    %c18_i32 = arith.constant 18 : i32
    %220 = arith.index_cast %c18_i32 : i32 to index
    %c0_73 = arith.constant 0 : index
    %c0_74 = arith.constant 0 : index
    %221 = vector.load %arg1[%220, %c0_73, %c0_74] : memref<36x2x128xf32, #tpu.memory_space<vmem>>, vector<1x2x128xf32>
    %222 = vector.shape_cast %221 : vector<1x2x128xf32> to vector<2x128xf32>
    %223 = arith.index_cast %c18_i32 : i32 to index
    %c0_75 = arith.constant 0 : index
    %c0_76 = arith.constant 0 : index
    %224 = vector.load %arg2[%223, %c0_75, %c0_76] : memref<36x8x128xf32, #tpu.memory_space<vmem>>, vector<1x8x128xf32>
    %225 = vector.shape_cast %224 : vector<1x8x128xf32> to vector<8x128xf32>
    %226 = vector.shape_cast %222 : vector<2x128xf32> to vector<2x1x128xf32>
    %227 = vector.shape_cast %225 : vector<8x128xf32> to vector<1x8x128xf32>
    %228 = vector.broadcast %226 : vector<2x1x128xf32> to vector<2x8x128xf32>
    %229 = vector.broadcast %227 : vector<1x8x128xf32> to vector<2x8x128xf32>
    %230 = arith.mulf %228, %229 : vector<2x8x128xf32>
    %231 = arith.addf %219, %230 : vector<2x8x128xf32>
    %c19_i32 = arith.constant 19 : i32
    %232 = arith.index_cast %c19_i32 : i32 to index
    %c0_77 = arith.constant 0 : index
    %c0_78 = arith.constant 0 : index
    %233 = vector.load %arg1[%232, %c0_77, %c0_78] : memref<36x2x128xf32, #tpu.memory_space<vmem>>, vector<1x2x128xf32>
    %234 = vector.shape_cast %233 : vector<1x2x128xf32> to vector<2x128xf32>
    %235 = arith.index_cast %c19_i32 : i32 to index
    %c0_79 = arith.constant 0 : index
    %c0_80 = arith.constant 0 : index
    %236 = vector.load %arg2[%235, %c0_79, %c0_80] : memref<36x8x128xf32, #tpu.memory_space<vmem>>, vector<1x8x128xf32>
    %237 = vector.shape_cast %236 : vector<1x8x128xf32> to vector<8x128xf32>
    %238 = vector.shape_cast %234 : vector<2x128xf32> to vector<2x1x128xf32>
    %239 = vector.shape_cast %237 : vector<8x128xf32> to vector<1x8x128xf32>
    %240 = vector.broadcast %238 : vector<2x1x128xf32> to vector<2x8x128xf32>
    %241 = vector.broadcast %239 : vector<1x8x128xf32> to vector<2x8x128xf32>
    %242 = arith.mulf %240, %241 : vector<2x8x128xf32>
    %243 = arith.addf %231, %242 : vector<2x8x128xf32>
    %c20_i32 = arith.constant 20 : i32
    %244 = arith.index_cast %c20_i32 : i32 to index
    %c0_81 = arith.constant 0 : index
    %c0_82 = arith.constant 0 : index
    %245 = vector.load %arg1[%244, %c0_81, %c0_82] : memref<36x2x128xf32, #tpu.memory_space<vmem>>, vector<1x2x128xf32>
    %246 = vector.shape_cast %245 : vector<1x2x128xf32> to vector<2x128xf32>
    %247 = arith.index_cast %c20_i32 : i32 to index
    %c0_83 = arith.constant 0 : index
    %c0_84 = arith.constant 0 : index
    %248 = vector.load %arg2[%247, %c0_83, %c0_84] : memref<36x8x128xf32, #tpu.memory_space<vmem>>, vector<1x8x128xf32>
    %249 = vector.shape_cast %248 : vector<1x8x128xf32> to vector<8x128xf32>
    %250 = vector.shape_cast %246 : vector<2x128xf32> to vector<2x1x128xf32>
    %251 = vector.shape_cast %249 : vector<8x128xf32> to vector<1x8x128xf32>
    %252 = vector.broadcast %250 : vector<2x1x128xf32> to vector<2x8x128xf32>
    %253 = vector.broadcast %251 : vector<1x8x128xf32> to vector<2x8x128xf32>
    %254 = arith.mulf %252, %253 : vector<2x8x128xf32>
    %255 = arith.addf %243, %254 : vector<2x8x128xf32>
    %c21_i32 = arith.constant 21 : i32
    %256 = arith.index_cast %c21_i32 : i32 to index
    %c0_85 = arith.constant 0 : index
    %c0_86 = arith.constant 0 : index
    %257 = vector.load %arg1[%256, %c0_85, %c0_86] : memref<36x2x128xf32, #tpu.memory_space<vmem>>, vector<1x2x128xf32>
    %258 = vector.shape_cast %257 : vector<1x2x128xf32> to vector<2x128xf32>
    %259 = arith.index_cast %c21_i32 : i32 to index
    %c0_87 = arith.constant 0 : index
    %c0_88 = arith.constant 0 : index
    %260 = vector.load %arg2[%259, %c0_87, %c0_88] : memref<36x8x128xf32, #tpu.memory_space<vmem>>, vector<1x8x128xf32>
    %261 = vector.shape_cast %260 : vector<1x8x128xf32> to vector<8x128xf32>
    %262 = vector.shape_cast %258 : vector<2x128xf32> to vector<2x1x128xf32>
    %263 = vector.shape_cast %261 : vector<8x128xf32> to vector<1x8x128xf32>
    %264 = vector.broadcast %262 : vector<2x1x128xf32> to vector<2x8x128xf32>
    %265 = vector.broadcast %263 : vector<1x8x128xf32> to vector<2x8x128xf32>
    %266 = arith.mulf %264, %265 : vector<2x8x128xf32>
    %267 = arith.addf %255, %266 : vector<2x8x128xf32>
    %c22_i32 = arith.constant 22 : i32
    %268 = arith.index_cast %c22_i32 : i32 to index
    %c0_89 = arith.constant 0 : index
    %c0_90 = arith.constant 0 : index
    %269 = vector.load %arg1[%268, %c0_89, %c0_90] : memref<36x2x128xf32, #tpu.memory_space<vmem>>, vector<1x2x128xf32>
    %270 = vector.shape_cast %269 : vector<1x2x128xf32> to vector<2x128xf32>
    %271 = arith.index_cast %c22_i32 : i32 to index
    %c0_91 = arith.constant 0 : index
    %c0_92 = arith.constant 0 : index
    %272 = vector.load %arg2[%271, %c0_91, %c0_92] : memref<36x8x128xf32, #tpu.memory_space<vmem>>, vector<1x8x128xf32>
    %273 = vector.shape_cast %272 : vector<1x8x128xf32> to vector<8x128xf32>
    %274 = vector.shape_cast %270 : vector<2x128xf32> to vector<2x1x128xf32>
    %275 = vector.shape_cast %273 : vector<8x128xf32> to vector<1x8x128xf32>
    %276 = vector.broadcast %274 : vector<2x1x128xf32> to vector<2x8x128xf32>
    %277 = vector.broadcast %275 : vector<1x8x128xf32> to vector<2x8x128xf32>
    %278 = arith.mulf %276, %277 : vector<2x8x128xf32>
    %279 = arith.addf %267, %278 : vector<2x8x128xf32>
    %c23_i32 = arith.constant 23 : i32
    %280 = arith.index_cast %c23_i32 : i32 to index
    %c0_93 = arith.constant 0 : index
    %c0_94 = arith.constant 0 : index
    %281 = vector.load %arg1[%280, %c0_93, %c0_94] : memref<36x2x128xf32, #tpu.memory_space<vmem>>, vector<1x2x128xf32>
    %282 = vector.shape_cast %281 : vector<1x2x128xf32> to vector<2x128xf32>
    %283 = arith.index_cast %c23_i32 : i32 to index
    %c0_95 = arith.constant 0 : index
    %c0_96 = arith.constant 0 : index
    %284 = vector.load %arg2[%283, %c0_95, %c0_96] : memref<36x8x128xf32, #tpu.memory_space<vmem>>, vector<1x8x128xf32>
    %285 = vector.shape_cast %284 : vector<1x8x128xf32> to vector<8x128xf32>
    %286 = vector.shape_cast %282 : vector<2x128xf32> to vector<2x1x128xf32>
    %287 = vector.shape_cast %285 : vector<8x128xf32> to vector<1x8x128xf32>
    %288 = vector.broadcast %286 : vector<2x1x128xf32> to vector<2x8x128xf32>
    %289 = vector.broadcast %287 : vector<1x8x128xf32> to vector<2x8x128xf32>
    %290 = arith.mulf %288, %289 : vector<2x8x128xf32>
    %291 = arith.addf %279, %290 : vector<2x8x128xf32>
    %c24_i32 = arith.constant 24 : i32
    %292 = arith.index_cast %c24_i32 : i32 to index
    %c0_97 = arith.constant 0 : index
    %c0_98 = arith.constant 0 : index
    %293 = vector.load %arg1[%292, %c0_97, %c0_98] : memref<36x2x128xf32, #tpu.memory_space<vmem>>, vector<1x2x128xf32>
    %294 = vector.shape_cast %293 : vector<1x2x128xf32> to vector<2x128xf32>
    %295 = arith.index_cast %c24_i32 : i32 to index
    %c0_99 = arith.constant 0 : index
    %c0_100 = arith.constant 0 : index
    %296 = vector.load %arg2[%295, %c0_99, %c0_100] : memref<36x8x128xf32, #tpu.memory_space<vmem>>, vector<1x8x128xf32>
    %297 = vector.shape_cast %296 : vector<1x8x128xf32> to vector<8x128xf32>
    %298 = vector.shape_cast %294 : vector<2x128xf32> to vector<2x1x128xf32>
    %299 = vector.shape_cast %297 : vector<8x128xf32> to vector<1x8x128xf32>
    %300 = vector.broadcast %298 : vector<2x1x128xf32> to vector<2x8x128xf32>
    %301 = vector.broadcast %299 : vector<1x8x128xf32> to vector<2x8x128xf32>
    %302 = arith.mulf %300, %301 : vector<2x8x128xf32>
    %303 = arith.addf %291, %302 : vector<2x8x128xf32>
    %c25_i32 = arith.constant 25 : i32
    %304 = arith.index_cast %c25_i32 : i32 to index
    %c0_101 = arith.constant 0 : index
    %c0_102 = arith.constant 0 : index
    %305 = vector.load %arg1[%304, %c0_101, %c0_102] : memref<36x2x128xf32, #tpu.memory_space<vmem>>, vector<1x2x128xf32>
    %306 = vector.shape_cast %305 : vector<1x2x128xf32> to vector<2x128xf32>
    %307 = arith.index_cast %c25_i32 : i32 to index
    %c0_103 = arith.constant 0 : index
    %c0_104 = arith.constant 0 : index
    %308 = vector.load %arg2[%307, %c0_103, %c0_104] : memref<36x8x128xf32, #tpu.memory_space<vmem>>, vector<1x8x128xf32>
    %309 = vector.shape_cast %308 : vector<1x8x128xf32> to vector<8x128xf32>
    %310 = vector.shape_cast %306 : vector<2x128xf32> to vector<2x1x128xf32>
    %311 = vector.shape_cast %309 : vector<8x128xf32> to vector<1x8x128xf32>
    %312 = vector.broadcast %310 : vector<2x1x128xf32> to vector<2x8x128xf32>
    %313 = vector.broadcast %311 : vector<1x8x128xf32> to vector<2x8x128xf32>
    %314 = arith.mulf %312, %313 : vector<2x8x128xf32>
    %315 = arith.addf %303, %314 : vector<2x8x128xf32>
    %c26_i32 = arith.constant 26 : i32
    %316 = arith.index_cast %c26_i32 : i32 to index
    %c0_105 = arith.constant 0 : index
    %c0_106 = arith.constant 0 : index
    %317 = vector.load %arg1[%316, %c0_105, %c0_106] : memref<36x2x128xf32, #tpu.memory_space<vmem>>, vector<1x2x128xf32>
    %318 = vector.shape_cast %317 : vector<1x2x128xf32> to vector<2x128xf32>
    %319 = arith.index_cast %c26_i32 : i32 to index
    %c0_107 = arith.constant 0 : index
    %c0_108 = arith.constant 0 : index
    %320 = vector.load %arg2[%319, %c0_107, %c0_108] : memref<36x8x128xf32, #tpu.memory_space<vmem>>, vector<1x8x128xf32>
    %321 = vector.shape_cast %320 : vector<1x8x128xf32> to vector<8x128xf32>
    %322 = vector.shape_cast %318 : vector<2x128xf32> to vector<2x1x128xf32>
    %323 = vector.shape_cast %321 : vector<8x128xf32> to vector<1x8x128xf32>
    %324 = vector.broadcast %322 : vector<2x1x128xf32> to vector<2x8x128xf32>
    %325 = vector.broadcast %323 : vector<1x8x128xf32> to vector<2x8x128xf32>
    %326 = arith.mulf %324, %325 : vector<2x8x128xf32>
    %327 = arith.addf %315, %326 : vector<2x8x128xf32>
    %c27_i32 = arith.constant 27 : i32
    %328 = arith.index_cast %c27_i32 : i32 to index
    %c0_109 = arith.constant 0 : index
    %c0_110 = arith.constant 0 : index
    %329 = vector.load %arg1[%328, %c0_109, %c0_110] : memref<36x2x128xf32, #tpu.memory_space<vmem>>, vector<1x2x128xf32>
    %330 = vector.shape_cast %329 : vector<1x2x128xf32> to vector<2x128xf32>
    %331 = arith.index_cast %c27_i32 : i32 to index
    %c0_111 = arith.constant 0 : index
    %c0_112 = arith.constant 0 : index
    %332 = vector.load %arg2[%331, %c0_111, %c0_112] : memref<36x8x128xf32, #tpu.memory_space<vmem>>, vector<1x8x128xf32>
    %333 = vector.shape_cast %332 : vector<1x8x128xf32> to vector<8x128xf32>
    %334 = vector.shape_cast %330 : vector<2x128xf32> to vector<2x1x128xf32>
    %335 = vector.shape_cast %333 : vector<8x128xf32> to vector<1x8x128xf32>
    %336 = vector.broadcast %334 : vector<2x1x128xf32> to vector<2x8x128xf32>
    %337 = vector.broadcast %335 : vector<1x8x128xf32> to vector<2x8x128xf32>
    %338 = arith.mulf %336, %337 : vector<2x8x128xf32>
    %339 = arith.addf %327, %338 : vector<2x8x128xf32>
    %c28_i32 = arith.constant 28 : i32
    %340 = arith.index_cast %c28_i32 : i32 to index
    %c0_113 = arith.constant 0 : index
    %c0_114 = arith.constant 0 : index
    %341 = vector.load %arg1[%340, %c0_113, %c0_114] : memref<36x2x128xf32, #tpu.memory_space<vmem>>, vector<1x2x128xf32>
    %342 = vector.shape_cast %341 : vector<1x2x128xf32> to vector<2x128xf32>
    %343 = arith.index_cast %c28_i32 : i32 to index
    %c0_115 = arith.constant 0 : index
    %c0_116 = arith.constant 0 : index
    %344 = vector.load %arg2[%343, %c0_115, %c0_116] : memref<36x8x128xf32, #tpu.memory_space<vmem>>, vector<1x8x128xf32>
    %345 = vector.shape_cast %344 : vector<1x8x128xf32> to vector<8x128xf32>
    %346 = vector.shape_cast %342 : vector<2x128xf32> to vector<2x1x128xf32>
    %347 = vector.shape_cast %345 : vector<8x128xf32> to vector<1x8x128xf32>
    %348 = vector.broadcast %346 : vector<2x1x128xf32> to vector<2x8x128xf32>
    %349 = vector.broadcast %347 : vector<1x8x128xf32> to vector<2x8x128xf32>
    %350 = arith.mulf %348, %349 : vector<2x8x128xf32>
    %351 = arith.addf %339, %350 : vector<2x8x128xf32>
    %c29_i32 = arith.constant 29 : i32
    %352 = arith.index_cast %c29_i32 : i32 to index
    %c0_117 = arith.constant 0 : index
    %c0_118 = arith.constant 0 : index
    %353 = vector.load %arg1[%352, %c0_117, %c0_118] : memref<36x2x128xf32, #tpu.memory_space<vmem>>, vector<1x2x128xf32>
    %354 = vector.shape_cast %353 : vector<1x2x128xf32> to vector<2x128xf32>
    %355 = arith.index_cast %c29_i32 : i32 to index
    %c0_119 = arith.constant 0 : index
    %c0_120 = arith.constant 0 : index
    %356 = vector.load %arg2[%355, %c0_119, %c0_120] : memref<36x8x128xf32, #tpu.memory_space<vmem>>, vector<1x8x128xf32>
    %357 = vector.shape_cast %356 : vector<1x8x128xf32> to vector<8x128xf32>
    %358 = vector.shape_cast %354 : vector<2x128xf32> to vector<2x1x128xf32>
    %359 = vector.shape_cast %357 : vector<8x128xf32> to vector<1x8x128xf32>
    %360 = vector.broadcast %358 : vector<2x1x128xf32> to vector<2x8x128xf32>
    %361 = vector.broadcast %359 : vector<1x8x128xf32> to vector<2x8x128xf32>
    %362 = arith.mulf %360, %361 : vector<2x8x128xf32>
    %363 = arith.addf %351, %362 : vector<2x8x128xf32>
    %c30_i32 = arith.constant 30 : i32
    %364 = arith.index_cast %c30_i32 : i32 to index
    %c0_121 = arith.constant 0 : index
    %c0_122 = arith.constant 0 : index
    %365 = vector.load %arg1[%364, %c0_121, %c0_122] : memref<36x2x128xf32, #tpu.memory_space<vmem>>, vector<1x2x128xf32>
    %366 = vector.shape_cast %365 : vector<1x2x128xf32> to vector<2x128xf32>
    %367 = arith.index_cast %c30_i32 : i32 to index
    %c0_123 = arith.constant 0 : index
    %c0_124 = arith.constant 0 : index
    %368 = vector.load %arg2[%367, %c0_123, %c0_124] : memref<36x8x128xf32, #tpu.memory_space<vmem>>, vector<1x8x128xf32>
    %369 = vector.shape_cast %368 : vector<1x8x128xf32> to vector<8x128xf32>
    %370 = vector.shape_cast %366 : vector<2x128xf32> to vector<2x1x128xf32>
    %371 = vector.shape_cast %369 : vector<8x128xf32> to vector<1x8x128xf32>
    %372 = vector.broadcast %370 : vector<2x1x128xf32> to vector<2x8x128xf32>
    %373 = vector.broadcast %371 : vector<1x8x128xf32> to vector<2x8x128xf32>
    %374 = arith.mulf %372, %373 : vector<2x8x128xf32>
    %375 = arith.addf %363, %374 : vector<2x8x128xf32>
    %c31_i32 = arith.constant 31 : i32
    %376 = arith.index_cast %c31_i32 : i32 to index
    %c0_125 = arith.constant 0 : index
    %c0_126 = arith.constant 0 : index
    %377 = vector.load %arg1[%376, %c0_125, %c0_126] : memref<36x2x128xf32, #tpu.memory_space<vmem>>, vector<1x2x128xf32>
    %378 = vector.shape_cast %377 : vector<1x2x128xf32> to vector<2x128xf32>
    %379 = arith.index_cast %c31_i32 : i32 to index
    %c0_127 = arith.constant 0 : index
    %c0_128 = arith.constant 0 : index
    %380 = vector.load %arg2[%379, %c0_127, %c0_128] : memref<36x8x128xf32, #tpu.memory_space<vmem>>, vector<1x8x128xf32>
    %381 = vector.shape_cast %380 : vector<1x8x128xf32> to vector<8x128xf32>
    %382 = vector.shape_cast %378 : vector<2x128xf32> to vector<2x1x128xf32>
    %383 = vector.shape_cast %381 : vector<8x128xf32> to vector<1x8x128xf32>
    %384 = vector.broadcast %382 : vector<2x1x128xf32> to vector<2x8x128xf32>
    %385 = vector.broadcast %383 : vector<1x8x128xf32> to vector<2x8x128xf32>
    %386 = arith.mulf %384, %385 : vector<2x8x128xf32>
    %387 = arith.addf %375, %386 : vector<2x8x128xf32>
    %c32_i32 = arith.constant 32 : i32
    %388 = arith.index_cast %c32_i32 : i32 to index
    %c0_129 = arith.constant 0 : index
    %c0_130 = arith.constant 0 : index
    %389 = vector.load %arg1[%388, %c0_129, %c0_130] : memref<36x2x128xf32, #tpu.memory_space<vmem>>, vector<1x2x128xf32>
    %390 = vector.shape_cast %389 : vector<1x2x128xf32> to vector<2x128xf32>
    %391 = arith.index_cast %c32_i32 : i32 to index
    %c0_131 = arith.constant 0 : index
    %c0_132 = arith.constant 0 : index
    %392 = vector.load %arg2[%391, %c0_131, %c0_132] : memref<36x8x128xf32, #tpu.memory_space<vmem>>, vector<1x8x128xf32>
    %393 = vector.shape_cast %392 : vector<1x8x128xf32> to vector<8x128xf32>
    %394 = vector.shape_cast %390 : vector<2x128xf32> to vector<2x1x128xf32>
    %395 = vector.shape_cast %393 : vector<8x128xf32> to vector<1x8x128xf32>
    %396 = vector.broadcast %394 : vector<2x1x128xf32> to vector<2x8x128xf32>
    %397 = vector.broadcast %395 : vector<1x8x128xf32> to vector<2x8x128xf32>
    %398 = arith.mulf %396, %397 : vector<2x8x128xf32>
    %399 = arith.addf %387, %398 : vector<2x8x128xf32>
    %c33_i32 = arith.constant 33 : i32
    %400 = arith.index_cast %c33_i32 : i32 to index
    %c0_133 = arith.constant 0 : index
    %c0_134 = arith.constant 0 : index
    %401 = vector.load %arg1[%400, %c0_133, %c0_134] : memref<36x2x128xf32, #tpu.memory_space<vmem>>, vector<1x2x128xf32>
    %402 = vector.shape_cast %401 : vector<1x2x128xf32> to vector<2x128xf32>
    %403 = arith.index_cast %c33_i32 : i32 to index
    %c0_135 = arith.constant 0 : index
    %c0_136 = arith.constant 0 : index
    %404 = vector.load %arg2[%403, %c0_135, %c0_136] : memref<36x8x128xf32, #tpu.memory_space<vmem>>, vector<1x8x128xf32>
    %405 = vector.shape_cast %404 : vector<1x8x128xf32> to vector<8x128xf32>
    %406 = vector.shape_cast %402 : vector<2x128xf32> to vector<2x1x128xf32>
    %407 = vector.shape_cast %405 : vector<8x128xf32> to vector<1x8x128xf32>
    %408 = vector.broadcast %406 : vector<2x1x128xf32> to vector<2x8x128xf32>
    %409 = vector.broadcast %407 : vector<1x8x128xf32> to vector<2x8x128xf32>
    %410 = arith.mulf %408, %409 : vector<2x8x128xf32>
    %411 = arith.addf %399, %410 : vector<2x8x128xf32>
    %c34_i32 = arith.constant 34 : i32
    %412 = arith.index_cast %c34_i32 : i32 to index
    %c0_137 = arith.constant 0 : index
    %c0_138 = arith.constant 0 : index
    %413 = vector.load %arg1[%412, %c0_137, %c0_138] : memref<36x2x128xf32, #tpu.memory_space<vmem>>, vector<1x2x128xf32>
    %414 = vector.shape_cast %413 : vector<1x2x128xf32> to vector<2x128xf32>
    %415 = arith.index_cast %c34_i32 : i32 to index
    %c0_139 = arith.constant 0 : index
    %c0_140 = arith.constant 0 : index
    %416 = vector.load %arg2[%415, %c0_139, %c0_140] : memref<36x8x128xf32, #tpu.memory_space<vmem>>, vector<1x8x128xf32>
    %417 = vector.shape_cast %416 : vector<1x8x128xf32> to vector<8x128xf32>
    %418 = vector.shape_cast %414 : vector<2x128xf32> to vector<2x1x128xf32>
    %419 = vector.shape_cast %417 : vector<8x128xf32> to vector<1x8x128xf32>
    %420 = vector.broadcast %418 : vector<2x1x128xf32> to vector<2x8x128xf32>
    %421 = vector.broadcast %419 : vector<1x8x128xf32> to vector<2x8x128xf32>
    %422 = arith.mulf %420, %421 : vector<2x8x128xf32>
    %423 = arith.addf %411, %422 : vector<2x8x128xf32>
    %c35_i32 = arith.constant 35 : i32
    %424 = arith.index_cast %c35_i32 : i32 to index
    %c0_141 = arith.constant 0 : index
    %c0_142 = arith.constant 0 : index
    %425 = vector.load %arg1[%424, %c0_141, %c0_142] : memref<36x2x128xf32, #tpu.memory_space<vmem>>, vector<1x2x128xf32>
    %426 = vector.shape_cast %425 : vector<1x2x128xf32> to vector<2x128xf32>
    %427 = arith.index_cast %c35_i32 : i32 to index
    %c0_143 = arith.constant 0 : index
    %c0_144 = arith.constant 0 : index
    %428 = vector.load %arg2[%427, %c0_143, %c0_144] : memref<36x8x128xf32, #tpu.memory_space<vmem>>, vector<1x8x128xf32>
    %429 = vector.shape_cast %428 : vector<1x8x128xf32> to vector<8x128xf32>
    %430 = vector.shape_cast %426 : vector<2x128xf32> to vector<2x1x128xf32>
    %431 = vector.shape_cast %429 : vector<8x128xf32> to vector<1x8x128xf32>
    %432 = vector.broadcast %430 : vector<2x1x128xf32> to vector<2x8x128xf32>
    %433 = vector.broadcast %431 : vector<1x8x128xf32> to vector<2x8x128xf32>
    %434 = arith.mulf %432, %433 : vector<2x8x128xf32>
    %435 = arith.addf %423, %434 : vector<2x8x128xf32>
    %c36_i32 = arith.constant 36 : i32
    %c0_145 = arith.constant 0 : index
    %c0_146 = arith.constant 0 : index
    %c0_147 = arith.constant 0 : index
    %436 = vector.load %arg4[%c0_145, %c0_146, %c0_147] : memref<2x8x128xf32, #tpu.memory_space<vmem>>, vector<2x8x128xf32>
    tpu.vector_store %arg4[%c0_145, %c0_146, %c0_147], %435 {strides = array<i32>} : memref<2x8x128xf32, #tpu.memory_space<vmem>>, vector<2x8x128xf32>,
    return
  }
  func.func @transform_0(%arg0: i32) -> (i32, i32, i32) {
    %c0_i32 = arith.constant 0 : i32
    %c0_i32_0 = arith.constant 0 : i32
    %c0_i32_1 = arith.constant 0 : i32
    return %c0_i32, %c0_i32_0, %arg0 : i32, i32, i32
  }
  func.func @transform_1(%arg0: i32) -> (i32, i32, i32) {
    %c0_i32 = arith.constant 0 : i32
    %c0_i32_0 = arith.constant 0 : i32
    %c0_i32_1 = arith.constant 0 : i32
    return %c0_i32, %c0_i32_0, %arg0 : i32, i32, i32
  }
  func.func @transform_2(%arg0: i32) -> (i32, i32) {
    %c0_i32 = arith.constant 0 : i32
    %c0_i32_0 = arith.constant 0 : i32
    return %c0_i32, %arg0 : i32, i32
  }
  func.func @transform_3(%arg0: i32) -> (i32, i32, i32) {
    %c0_i32 = arith.constant 0 : i32
    %c0_i32_0 = arith.constant 0 : i32
    %c0_i32_1 = arith.constant 0 : i32
    return %c0_i32, %c0_i32_0, %arg0 : i32, i32, i32
  }
}

</mosaic_0001>

<llo_original>
// kernel: tpu_custom_call.1
$region0: #{tpu_custom_call.1}
  #allocation0 [shape = 'u32[]', space=smem, size = 0x4, offset = 0x4, fixed_abs, tag = 'smem constant byte address 0x4 - core index']
  #allocation1 [shape = 'u32[144,128]{1,0:T(1,128)}', space=vmem, size = 0x12000, scoped, tag = 'internal scratch']
  %s0 = inlined_call_operand.hbm [shape: f32[36,2,256], index: 0, kind: input, shape index: {}]
  %s1 = inlined_call_operand.hbm [shape: f32[36,8,256], index: 1, kind: input, shape index: {}]
  %s2 = inlined_call_operand.hbm [shape: f32[8,256], index: 2, kind: input, shape index: {}]
  %s3 = inlined_call_operand.hbm [shape: f32[2,8,256], index: 3, kind: output, shape index: {}]
  %s4 = sld [smem:[#allocation0]]
  $region57: #{tpu_custom_call.1} parent=0
    _
  %s6 = ssub.s32 1, %s4
  %s7 = scalar_select 0, %s6, %s4
  $region1: #{tpu_custom_call.1} parent=0
    #allocation2 [shape = 'u8[73728]{0}', space=vmem, size = 0x12000, scoped, tag = 'input window, operand 0']
    #allocation3 [shape = 's32[2]{0}', space=sflag, size = 0x8, scoped, tag = 'scoped memory for tpu_custom_call.1']
    #allocation4 [shape = 's32[2]{0}', space=sflag, size = 0x8, scoped, tag = 'scoped memory for tpu_custom_call.1']
    #allocation5 [shape = 'u8[294912]{0}', space=vmem, size = 0x48000, scoped, tag = 'input window, operand 1']
    #allocation6 [shape = 's32[2]{0}', space=sflag, size = 0x8, scoped, tag = 'scoped memory for tpu_custom_call.1']
    #allocation7 [shape = 'u8[8192]{0}', space=vmem, size = 0x2000, scoped, tag = 'input window, operand 2']
    #allocation8 [shape = 'u8[16384]{0}', space=vmem, size = 0x4000, scoped, tag = 'output window, operand 0']
    %8 = vsyncpa [#allocation3], 0
    %s9 = scalar_lea.sflag [#allocation3], 1
    %10 = vsyncpa %s9, 0
    %11 = vsyncpa [#allocation6], 0
    %s12 = scalar_lea.sflag [#allocation6], 1
    %13 = vsyncpa %s12, 0
    %14 = vsyncpa [#allocation4], 0
    %s15 = scalar_lea.sflag [#allocation4], 1
    %16 = vsyncpa %s15, 0
    loop: start=0, step=1, limit=4
    $region2: #{tpu_custom_call.1} parent=1 // loop_pre_header
      _
    $region3: #{tpu_custom_call.1} parent=1 // loop_header
      %s18 = sphi 0, %s22
      %p19 = scmp.ge.s32.totalorder %s18, 4
      %s28 = sphi 0, %s30
      %s31 = sphi 0, %s28
      %s32 = sphi 0, %s31
      %s48 = sphi 0, %s32
      %s54 = sphi 0, %s56
      %s57 = sphi 0, %s54
      %s58 = sphi 0, %s57
      %s74 = sphi 0, %s58
      %s80 = sphi 0, %s82
      %s83 = sphi 0, %s80
      %s84 = sphi 0, %s83
      %s100 = sphi 0, %s84
      %s106 = sphi 0, %s108
      %s109 = sphi 0, %s106
      %s110 = sphi 0, %s109
      %s126 = sphi 0, %s110
    $region4: #{tpu_custom_call.1} parent=1 // loop_header_branch
      %21 = sbr.rel (%p19) target = $region8
    $region5: #{tpu_custom_call.1} parent=1 // loop_body
      %s23 = ssub.s32 %s18, 1
      %s24 = ssub.s32 %s18, 2
      %s25 = sadd.s32 %s18, 1
      %s26 = ssub.s32 %s18, %s25
      %p27 = scmp.eq.s32.totalorder %s26, 0
      %s29 = sadd.s32 %s28, 1
      %s30 = scalar_select %p27, %s28, %s29
      %p33 = pneg %p27
      %p34 = scmp.eq.s32.totalorder %s18, 1
      %p35 = por %p33, %p34
      %p36 = scmp.ne.s32.totalorder %s28, %s31
      %p37 = scmp.eq.s32.totalorder %s18, 0
      %p38 = por %p36, %p37
      %p39 = scmp.ne.s32.totalorder %s28, %s31
      %p40 = scmp.eq.s32.totalorder %s23, 1
      %p41 = por %p39, %p40
      %p42 = scmp.ne.s32.totalorder %s31, %s32
      %p43 = scmp.eq.s32.totalorder %s23, 0
      %p44 = por %p42, %p43
      %p45 = scmp.ne.s32.totalorder %s31, %s32
      %p46 = scmp.eq.s32.totalorder %s24, 1
      %p47 = por %p45, %p46
      %p49 = scmp.ne.s32.totalorder %s32, %s48
      %p50 = scmp.eq.s32.totalorder %s24, 0
      %p51 = por %p49, %p50
      %s52 = ssub.s32 %s18, %s25
      %p53 = scmp.eq.s32.totalorder %s52, 0
      %s55 = sadd.s32 %s54, 1
      %s56 = scalar_select %p53, %s54, %s55
      %p59 = pneg %p53
      %p60 = scmp.eq.s32.totalorder %s18, 1
      %p61 = por %p59, %p60
      %p62 = scmp.ne.s32.totalorder %s54, %s57
      %p63 = scmp.eq.s32.totalorder %s18, 0
      %p64 = por %p62, %p63
      %p65 = scmp.ne.s32.totalorder %s54, %s57
      %p66 = scmp.eq.s32.totalorder %s23, 1
      %p67 = por %p65, %p66
      %p68 = scmp.ne.s32.totalorder %s57, %s58
      %p69 = scmp.eq.s32.totalorder %s23, 0
      %p70 = por %p68, %p69
      %p71 = scmp.ne.s32.totalorder %s57, %s58
      %p72 = scmp.eq.s32.totalorder %s24, 1
      %p73 = por %p71, %p72
      %p75 = scmp.ne.s32.totalorder %s58, %s74
      %p76 = scmp.eq.s32.totalorder %s24, 0
      %p77 = por %p75, %p76
      %s78 = ssub.s32 %s18, %s25
      %p79 = scmp.eq.s32.totalorder %s78, 0
      %s81 = sadd.s32 %s80, 1
      %s82 = scalar_select %p79, %s80, %s81
      %p85 = pneg %p79
      %p86 = scmp.eq.s32.totalorder %s18, 1
      %p87 = por %p85, %p86
      %p88 = scmp.ne.s32.totalorder %s80, %s83
      %p89 = scmp.eq.s32.totalorder %s18, 0
      %p90 = por %p88, %p89
      %p91 = scmp.ne.s32.totalorder %s80, %s83
      %p92 = scmp.eq.s32.totalorder %s23, 1
      %p93 = por %p91, %p92
      %p94 = scmp.ne.s32.totalorder %s83, %s84
      %p95 = scmp.eq.s32.totalorder %s23, 0
      %p96 = por %p94, %p95
      %p97 = scmp.ne.s32.totalorder %s83, %s84
      %p98 = scmp.eq.s32.totalorder %s24, 1
      %p99 = por %p97, %p98
      %p101 = scmp.ne.s32.totalorder %s84, %s100
      %p102 = scmp.eq.s32.totalorder %s24, 0
      %p103 = por %p101, %p102
      %s104 = ssub.s32 %s18, %s25
      %p105 = scmp.eq.s32.totalorder %s104, 0
      %s107 = sadd.s32 %s106, 1
      %s108 = scalar_select %p105, %s106, %s107
      %p111 = pneg %p105
      %p112 = scmp.eq.s32.totalorder %s18, 1
      %p113 = por %p111, %p112
      %p114 = scmp.ne.s32.totalorder %s106, %s109
      %p115 = scmp.eq.s32.totalorder %s18, 0
      %p116 = por %p114, %p115
      %p117 = scmp.ne.s32.totalorder %s106, %s109
      %p118 = scmp.eq.s32.totalorder %s23, 1
      %p119 = por %p117, %p118
      %p120 = scmp.ne.s32.totalorder %s109, %s110
      %p121 = scmp.eq.s32.totalorder %s23, 0
      %p122 = por %p120, %p121
      %p123 = scmp.ne.s32.totalorder %s109, %s110
      %p124 = scmp.eq.s32.totalorder %s24, 1
      %p125 = por %p123, %p124
      %p127 = scmp.ne.s32.totalorder %s110, %s126
      %p128 = scmp.eq.s32.totalorder %s24, 0
      %p129 = por %p127, %p128
      %p130 = scmp.le.s32.totalorder 1, %s18
      %p131 = scmp.lt.s32.totalorder %s18, 3
      %p132 = pnand %p130, %p131
      %p133 = pneg %p132
      // Predicated region
      $region9: #{tpu_custom_call.1} parent=5 // pred_check
        _
      $region10: #{tpu_custom_call.1} parent=5 // pred_check_branch
        %135 = sbr.rel (%p132) target = $region12
      $region11: #{tpu_custom_call.1} parent=5 // pred_region
        %s136 = ssub.s32 %s18, 1
      $region12: #{tpu_custom_call.1} parent=5 // pred_fallthru
        _
      %p137 = scmp.lt.s32.totalorder %s18, 2
      // Predicated region
      $region13: #{tpu_custom_call.1} parent=5 // pred_check
        %p138 = pneg %p137
      $region14: #{tpu_custom_call.1} parent=5 // pred_check_branch
        %140 = sbr.rel (%p138) target = $region16
      $region15: #{tpu_custom_call.1} parent=5 // pred_region
        // Predicated region
        $region17: #{tpu_custom_call.1} parent=15 // pred_check
          %p141 = pneg %p38
        $region18: #{tpu_custom_call.1} parent=15 // pred_check_branch
          %143 = sbr.rel (%p141) target = $region20
        $region19: #{tpu_custom_call.1} parent=15 // pred_region
          %s144 = sand.u32 %s28, 1
          %s145 = scalar_lea.sflag [#allocation3], %s144
          %s146 = sand.u32 %s28, 1
          %s147 = smul.addr %s146, 72
          %s148 = scalar_lea.vmem [#allocation2], %s147
          %s150 = ssub.s32 1152, 1152
          %151 = vsyncadd %s145, %s150
          %s152 = smul.addr %s18, 32
          %s153 = scalar_lea.hbm %s0, %s152
          %s154 = sshll.u32 %s148, 4
          %s155 = int_to_ptr.vmem [resolvable:$true] %s154
          %160 = dma.hbm_to_vmem [thread:$0]  %s153, 1152, %s155, %s145, 64, 32, 2
        $region20: #{tpu_custom_call.1} parent=15 // pred_fallthru
          _
        // Predicated region
        $region21: #{tpu_custom_call.1} parent=15 // pred_check
          %p161 = pneg %p64
        $region22: #{tpu_custom_call.1} parent=15 // pred_check_branch
          %163 = sbr.rel (%p161) target = $region24
        $region23: #{tpu_custom_call.1} parent=15 // pred_region
          %s164 = sand.u32 %s18, 1
          %s165 = scalar_lea.sflag [#allocation6], %s164
          %s166 = sand.u32 %s54, 1
          %s167 = smul.addr %s166, 288
          %s168 = scalar_lea.vmem [#allocation5], %s167
          %s170 = ssub.s32 4608, 4608
          %171 = vsyncadd %s165, %s170
          %s172 = smul.addr %s18, 128
          %s173 = scalar_lea.hbm %s1, %s172
          %s174 = sshll.u32 %s168, 4
          %s175 = int_to_ptr.vmem [resolvable:$true] %s174
          %180 = dma.hbm_to_vmem [thread:$0]  %s173, 4608, %s175, %s165, 256, 128, 8
        $region24: #{tpu_custom_call.1} parent=15 // pred_fallthru
          _
        // Predicated region
        $region25: #{tpu_custom_call.1} parent=15 // pred_check
          %p181 = pneg %p90
        $region26: #{tpu_custom_call.1} parent=15 // pred_check_branch
          %183 = sbr.rel (%p181) target = $region28
        $region27: #{tpu_custom_call.1} parent=15 // pred_region
          %s184 = sand.u32 %s18, 1
          %s185 = scalar_lea.sflag [#allocation6], %s184
          %s186 = sand.u32 %s80, 1
          %s187 = smul.addr %s186, 8
          %s188 = scalar_lea.vmem [#allocation7], %s187
          %s190 = ssub.s32 128, 128
          %191 = vsyncadd %s185, %s190
          %s192 = smul.addr %s18, 128
          %s193 = scalar_lea.hbm %s2, %s192
          %s195 = sshll.u32 %s188, 4
          %s196 = int_to_ptr.vmem [resolvable:$true] %s195
          %198 = dma.hbm_to_vmem [thread:$0]  %s193, 128, %s196, %s185
        $region28: #{tpu_custom_call.1} parent=15 // pred_fallthru
          _
      $region16: #{tpu_custom_call.1} parent=5 // pred_fallthru
        _
      %p199 = scmp.le.s32.totalorder 1, %s18
      %p200 = scmp.lt.s32.totalorder %s18, 3
      %p201 = pnand %p199, %p200
      %p202 = pneg %p201
      // Predicated region
      $region29: #{tpu_custom_call.1} parent=5 // pred_check
        _
      $region30: #{tpu_custom_call.1} parent=5 // pred_check_branch
        %204 = sbr.rel (%p201) target = $region32
      $region31: #{tpu_custom_call.1} parent=5 // pred_region
        %s205 = ssub.s32 %s18, 1
        %s206 = sand.u32 %s31, 1
        %s207 = scalar_lea.sflag [#allocation3], %s206
        %s208 = sand.u32 %s31, 1
        %s209 = smul.addr %s208, 72
        %s210 = scalar_lea.vmem [#allocation2], %s209
        // Predicated region
        $region33: #{tpu_custom_call.1} parent=31 // pred_check
          %p211 = pneg %p44
        $region34: #{tpu_custom_call.1} parent=31 // pred_check_branch
          %213 = sbr.rel (%p211) target = $region36
        $region35: #{tpu_custom_call.1} parent=31 // pred_region
          %214 = dma.done %s207, 1152
        $region36: #{tpu_custom_call.1} parent=31 // pred_fallthru
          _
        %s215 = sand.u32 %s23, 1
        %s216 = scalar_lea.sflag [#allocation6], %s215
        %s217 = sand.u32 %s57, 1
        %s218 = smul.addr %s217, 288
        %s219 = scalar_lea.vmem [#allocation5], %s218
        // Predicated region
        $region37: #{tpu_custom_call.1} parent=31 // pred_check
          %p220 = pneg %p70
        $region38: #{tpu_custom_call.1} parent=31 // pred_check_branch
          %222 = sbr.rel (%p220) target = $region40
        $region39: #{tpu_custom_call.1} parent=31 // pred_region
          %223 = dma.done %s216, 4608
        $region40: #{tpu_custom_call.1} parent=31 // pred_fallthru
          _
        %s224 = sand.u32 %s23, 1
        %s225 = scalar_lea.sflag [#allocation6], %s224
        %s226 = sand.u32 %s83, 1
        %s227 = smul.addr %s226, 8
        %s228 = scalar_lea.vmem [#allocation7], %s227
        // Predicated region
        $region41: #{tpu_custom_call.1} parent=31 // pred_check
          %p229 = pneg %p96
        $region42: #{tpu_custom_call.1} parent=31 // pred_check_branch
          %231 = sbr.rel (%p229) target = $region44
        $region43: #{tpu_custom_call.1} parent=31 // pred_region
          %232 = dma.done %s225, 128
        $region44: #{tpu_custom_call.1} parent=31 // pred_fallthru
          _
        %s233 = sand.u32 %s31, 1
        %s234 = scalar_lea.sflag [#allocation3], %s233
        %s235 = sand.u32 %s31, 1
        %s236 = smul.addr %s235, 72
        %s237 = scalar_lea.vmem [#allocation2], %s236
        %p238 = pneg %p44
        %p239 = pneg %p41
        %s240 = sand.u32 %s23, 1
        %s241 = scalar_lea.sflag [#allocation6], %s240
        %s242 = sand.u32 %s57, 1
        %s243 = smul.addr %s242, 288
        %s244 = scalar_lea.vmem [#allocation5], %s243
        %p245 = pneg %p70
        %p246 = pneg %p67
        %s247 = sand.u32 %s23, 1
        %s248 = scalar_lea.sflag [#allocation6], %s247
        %s249 = sand.u32 %s83, 1
        %s250 = smul.addr %s249, 8
        %s251 = scalar_lea.vmem [#allocation7], %s250
        %p252 = pneg %p96
        %p253 = pneg %p93
        %p254 = pneg %p122
        %p255 = pneg %p119
        %s256 = sand.u32 %s109, 1
        %s257 = scalar_lea.sflag [#allocation4], %s256
        %s258 = sand.u32 %s109, 1
        %s259 = smul.addr %s258, 16
        %s260 = scalar_lea.vmem [#allocation8], %s259
        %v261 = vld [vmem:[%s228] sm:$0xff]
        %v262 = vld [vmem:[%s210] sm:$0x3]
        %v263 = vld [vmem:[%s219] sm:$0xff]
        %v266 = vunpack.c.l.s4 1966171168
        %v267 = vunpack.c.0.s8 %v266
        %v268 = vlaneseq
        %v269 = vshrl.u32 %v268, 7
        %v270 = vsub.s32 %v267, %v269
        %v271 = vrot.slane %v262, %v270
        %v272 = vcombine.high %v271, %v271
        %v274 = vunpack.c.l.s4 1966171168
        %v275 = vunpack.c.0.s8 %v274
        %v276 = vlaneseq
        %v277 = vshrl.u32 %v276, 7
        %v278 = vsub.s32 %v275, %v277
        %v279 = vrot.slane %v271, %v278
        %v281 = vunpack.c.l.s4 1966171168
        %v282 = vunpack.c.0.s8 %v281
        %v283 = vlaneseq
        %v284 = vshrl.u32 %v283, 7
        %v285 = vsub.s32 %v282, %v284
        %v286 = vrot.slane %v272, %v285
        %v287 = vlaneseq
        %v288 = vshrl.u32 %v287, 7
        %v289 = vsub.s32 0, %v288
        %v290 = vrot.slane %v279, %v289
        %v291 = vlaneseq
        %v292 = vshrl.u32 %v291, 7
        %v293 = vsub.s32 0, %v292
        %v294 = vrot.slane %v286, %v293
        %v297 = vmul.f32 %v290, %v263
        %v298 = vmul.f32 %v294, %v263
        %v299 = vadd.f32 %v261, %v297
        %v300 = vadd.f32 %v261, %v298
        %s301 = scalar_lea.vmem %s210, 2 [#allocation2]
        %v302 = vld [vmem:[%s301] sm:$0x3]
        %s303 = scalar_lea.vmem %s219, 8 [#allocation5]
        %v304 = vld [vmem:[%s303] sm:$0xff]
        %v307 = vunpack.c.l.s4 1966171168
        %v308 = vunpack.c.0.s8 %v307
        %v309 = vlaneseq
        %v310 = vshrl.u32 %v309, 7
        %v311 = vsub.s32 %v308, %v310
        %v312 = vrot.slane %v302, %v311
        %v313 = vcombine.high %v312, %v312
        %v315 = vunpack.c.l.s4 1966171168
        %v316 = vunpack.c.0.s8 %v315
        %v317 = vlaneseq
        %v318 = vshrl.u32 %v317, 7
        %v319 = vsub.s32 %v316, %v318
        %v320 = vrot.slane %v312, %v319
        %v322 = vunpack.c.l.s4 1966171168
        %v323 = vunpack.c.0.s8 %v322
        %v324 = vlaneseq
        %v325 = vshrl.u32 %v324, 7
        %v326 = vsub.s32 %v323, %v325
        %v327 = vrot.slane %v313, %v326
        %v328 = vlaneseq
        %v329 = vshrl.u32 %v328, 7
        %v330 = vsub.s32 0, %v329
        %v331 = vrot.slane %v320, %v330
        %v332 = vlaneseq
        %v333 = vshrl.u32 %v332, 7
        %v334 = vsub.s32 0, %v333
        %v335 = vrot.slane %v327, %v334
        %v338 = vmul.f32 %v331, %v304
        %v339 = vmul.f32 %v335, %v304
        %v340 = vadd.f32 %v299, %v338
        %v341 = vadd.f32 %v300, %v339
        %s342 = scalar_lea.vmem %s210, 4 [#allocation2]
        %v343 = vld [vmem:[%s342] sm:$0x3]
        %s344 = scalar_lea.vmem %s219, 16 [#allocation5]
        %v345 = vld [vmem:[%s344] sm:$0xff]
        %v348 = vunpack.c.l.s4 1966171168
        %v349 = vunpack.c.0.s8 %v348
        %v350 = vlaneseq
        %v351 = vshrl.u32 %v350, 7
        %v352 = vsub.s32 %v349, %v351
        %v353 = vrot.slane %v343, %v352
        %v354 = vcombine.high %v353, %v353
        %v356 = vunpack.c.l.s4 1966171168
        %v357 = vunpack.c.0.s8 %v356
        %v358 = vlaneseq
        %v359 = vshrl.u32 %v358, 7
        %v360 = vsub.s32 %v357, %v359
        %v361 = vrot.slane %v353, %v360
        %v363 = vunpack.c.l.s4 1966171168
        %v364 = vunpack.c.0.s8 %v363
        %v365 = vlaneseq
        %v366 = vshrl.u32 %v365, 7
        %v367 = vsub.s32 %v364, %v366
        %v368 = vrot.slane %v354, %v367
        %v369 = vlaneseq
        %v370 = vshrl.u32 %v369, 7
        %v371 = vsub.s32 0, %v370
        %v372 = vrot.slane %v361, %v371
        %v373 = vlaneseq
        %v374 = vshrl.u32 %v373, 7
        %v375 = vsub.s32 0, %v374
        %v376 = vrot.slane %v368, %v375
        %v379 = vmul.f32 %v372, %v345
        %v380 = vmul.f32 %v376, %v345
        %v381 = vadd.f32 %v340, %v379
        %v382 = vadd.f32 %v341, %v380
        %s383 = scalar_lea.vmem %s210, 6 [#allocation2]
        %v384 = vld [vmem:[%s383] sm:$0x3]
        %s385 = scalar_lea.vmem %s219, 24 [#allocation5]
        %v386 = vld [vmem:[%s385] sm:$0xff]
        %v389 = vunpack.c.l.s4 1966171168
        %v390 = vunpack.c.0.s8 %v389
        %v391 = vlaneseq
        %v392 = vshrl.u32 %v391, 7
        %v393 = vsub.s32 %v390, %v392
        %v394 = vrot.slane %v384, %v393
        %v395 = vcombine.high %v394, %v394
        %v397 = vunpack.c.l.s4 1966171168
        %v398 = vunpack.c.0.s8 %v397
        %v399 = vlaneseq
        %v400 = vshrl.u32 %v399, 7
        %v401 = vsub.s32 %v398, %v400
        %v402 = vrot.slane %v394, %v401
        %v404 = vunpack.c.l.s4 1966171168
        %v405 = vunpack.c.0.s8 %v404
        %v406 = vlaneseq
        %v407 = vshrl.u32 %v406, 7
        %v408 = vsub.s32 %v405, %v407
        %v409 = vrot.slane %v395, %v408
        %v410 = vlaneseq
        %v411 = vshrl.u32 %v410, 7
        %v412 = vsub.s32 0, %v411
        %v413 = vrot.slane %v402, %v412
        %v414 = vlaneseq
        %v415 = vshrl.u32 %v414, 7
        %v416 = vsub.s32 0, %v415
        %v417 = vrot.slane %v409, %v416
        %v420 = vmul.f32 %v413, %v386
        %v421 = vmul.f32 %v417, %v386
        %v422 = vadd.f32 %v381, %v420
        %v423 = vadd.f32 %v382, %v421
        %s424 = scalar_lea.vmem %s210, 8 [#allocation2]
        %v425 = vld [vmem:[%s424] sm:$0x3]
        %s426 = scalar_lea.vmem %s219, 32 [#allocation5]
        %v427 = vld [vmem:[%s426] sm:$0xff]
        %v430 = vunpack.c.l.s4 1966171168
        %v431 = vunpack.c.0.s8 %v430
        %v432 = vlaneseq
        %v433 = vshrl.u32 %v432, 7
        %v434 = vsub.s32 %v431, %v433
        %v435 = vrot.slane %v425, %v434
        %v436 = vcombine.high %v435, %v435
        %v438 = vunpack.c.l.s4 1966171168
        %v439 = vunpack.c.0.s8 %v438
        %v440 = vlaneseq
        %v441 = vshrl.u32 %v440, 7
        %v442 = vsub.s32 %v439, %v441
        %v443 = vrot.slane %v435, %v442
        %v445 = vunpack.c.l.s4 1966171168
        %v446 = vunpack.c.0.s8 %v445
        %v447 = vlaneseq
        %v448 = vshrl.u32 %v447, 7
        %v449 = vsub.s32 %v446, %v448
        %v450 = vrot.slane %v436, %v449
        %v451 = vlaneseq
        %v452 = vshrl.u32 %v451, 7
        %v453 = vsub.s32 0, %v452
        %v454 = vrot.slane %v443, %v453
        %v455 = vlaneseq
        %v456 = vshrl.u32 %v455, 7
        %v457 = vsub.s32 0, %v456
        %v458 = vrot.slane %v450, %v457
        %v461 = vmul.f32 %v454, %v427
        %v462 = vmul.f32 %v458, %v427
        %v463 = vadd.f32 %v422, %v461
        %v464 = vadd.f32 %v423, %v462
        %s465 = scalar_lea.vmem %s210, 10 [#allocation2]
        %v466 = vld [vmem:[%s465] sm:$0x3]
        %s467 = scalar_lea.vmem %s219, 40 [#allocation5]
        %v468 = vld [vmem:[%s467] sm:$0xff]
        %v471 = vunpack.c.l.s4 1966171168
        %v472 = vunpack.c.0.s8 %v471
        %v473 = vlaneseq
        %v474 = vshrl.u32 %v473, 7
        %v475 = vsub.s32 %v472, %v474
        %v476 = vrot.slane %v466, %v475
        %v477 = vcombine.high %v476, %v476
        %v479 = vunpack.c.l.s4 1966171168
        %v480 = vunpack.c.0.s8 %v479
        %v481 = vlaneseq
        %v482 = vshrl.u32 %v481, 7
        %v483 = vsub.s32 %v480, %v482
        %v484 = vrot.slane %v476, %v483
        %v486 = vunpack.c.l.s4 1966171168
        %v487 = vunpack.c.0.s8 %v486
        %v488 = vlaneseq
        %v489 = vshrl.u32 %v488, 7
        %v490 = vsub.s32 %v487, %v489
        %v491 = vrot.slane %v477, %v490
        %v492 = vlaneseq
        %v493 = vshrl.u32 %v492, 7
        %v494 = vsub.s32 0, %v493
        %v495 = vrot.slane %v484, %v494
        %v496 = vlaneseq
        %v497 = vshrl.u32 %v496, 7
        %v498 = vsub.s32 0, %v497
        %v499 = vrot.slane %v491, %v498
        %v502 = vmul.f32 %v495, %v468
        %v503 = vmul.f32 %v499, %v468
        %v504 = vadd.f32 %v463, %v502
        %v505 = vadd.f32 %v464, %v503
        %s506 = scalar_lea.vmem %s210, 12 [#allocation2]
        %v507 = vld [vmem:[%s506] sm:$0x3]
        %s508 = scalar_lea.vmem %s219, 48 [#allocation5]
        %v509 = vld [vmem:[%s508] sm:$0xff]
        %v512 = vunpack.c.l.s4 1966171168
        %v513 = vunpack.c.0.s8 %v512
        %v514 = vlaneseq
        %v515 = vshrl.u32 %v514, 7
        %v516 = vsub.s32 %v513, %v515
        %v517 = vrot.slane %v507, %v516
        %v518 = vcombine.high %v517, %v517
        %v520 = vunpack.c.l.s4 1966171168
        %v521 = vunpack.c.0.s8 %v520
        %v522 = vlaneseq
        %v523 = vshrl.u32 %v522, 7
        %v524 = vsub.s32 %v521, %v523
        %v525 = vrot.slane %v517, %v524
        %v527 = vunpack.c.l.s4 1966171168
        %v528 = vunpack.c.0.s8 %v527
        %v529 = vlaneseq
        %v530 = vshrl.u32 %v529, 7
        %v531 = vsub.s32 %v528, %v530
        %v532 = vrot.slane %v518, %v531
        %v533 = vlaneseq
        %v534 = vshrl.u32 %v533, 7
        %v535 = vsub.s32 0, %v534
        %v536 = vrot.slane %v525, %v535
        %v537 = vlaneseq
        %v538 = vshrl.u32 %v537, 7
        %v539 = vsub.s32 0, %v538
        %v540 = vrot.slane %v532, %v539
        %v543 = vmul.f32 %v536, %v509
        %v544 = vmul.f32 %v540, %v509
        %v545 = vadd.f32 %v504, %v543
        %v546 = vadd.f32 %v505, %v544
        %s547 = scalar_lea.vmem %s210, 14 [#allocation2]
        %v548 = vld [vmem:[%s547] sm:$0x3]
        %s549 = scalar_lea.vmem %s219, 56 [#allocation5]
        %v550 = vld [vmem:[%s549] sm:$0xff]
        %v553 = vunpack.c.l.s4 1966171168
        %v554 = vunpack.c.0.s8 %v553
        %v555 = vlaneseq
        %v556 = vshrl.u32 %v555, 7
        %v557 = vsub.s32 %v554, %v556
        %v558 = vrot.slane %v548, %v557
        %v559 = vcombine.high %v558, %v558
        %v561 = vunpack.c.l.s4 1966171168
        %v562 = vunpack.c.0.s8 %v561
        %v563 = vlaneseq
        %v564 = vshrl.u32 %v563, 7
        %v565 = vsub.s32 %v562, %v564
        %v566 = vrot.slane %v558, %v565
        %v568 = vunpack.c.l.s4 1966171168
        %v569 = vunpack.c.0.s8 %v568
        %v570 = vlaneseq
        %v571 = vshrl.u32 %v570, 7
        %v572 = vsub.s32 %v569, %v571
        %v573 = vrot.slane %v559, %v572
        %v574 = vlaneseq
        %v575 = vshrl.u32 %v574, 7
        %v576 = vsub.s32 0, %v575
        %v577 = vrot.slane %v566, %v576
        %v578 = vlaneseq
        %v579 = vshrl.u32 %v578, 7
        %v580 = vsub.s32 0, %v579
        %v581 = vrot.slane %v573, %v580
        %v584 = vmul.f32 %v577, %v550
        %v585 = vmul.f32 %v581, %v550
        %v586 = vadd.f32 %v545, %v584
        %v587 = vadd.f32 %v546, %v585
        %s588 = scalar_lea.vmem %s210, 16 [#allocation2]
        %v589 = vld [vmem:[%s588] sm:$0x3]
        %s590 = scalar_lea.vmem %s219, 64 [#allocation5]
        %v591 = vld [vmem:[%s590] sm:$0xff]
        %v594 = vunpack.c.l.s4 1966171168
        %v595 = vunpack.c.0.s8 %v594
        %v596 = vlaneseq
        %v597 = vshrl.u32 %v596, 7
        %v598 = vsub.s32 %v595, %v597
        %v599 = vrot.slane %v589, %v598
        %v600 = vcombine.high %v599, %v599
        %v602 = vunpack.c.l.s4 1966171168
        %v603 = vunpack.c.0.s8 %v602
        %v604 = vlaneseq
        %v605 = vshrl.u32 %v604, 7
        %v606 = vsub.s32 %v603, %v605
        %v607 = vrot.slane %v599, %v606
        %v609 = vunpack.c.l.s4 1966171168
        %v610 = vunpack.c.0.s8 %v609
        %v611 = vlaneseq
        %v612 = vshrl.u32 %v611, 7
        %v613 = vsub.s32 %v610, %v612
        %v614 = vrot.slane %v600, %v613
        %v615 = vlaneseq
        %v616 = vshrl.u32 %v615, 7
        %v617 = vsub.s32 0, %v616
        %v618 = vrot.slane %v607, %v617
        %v619 = vlaneseq
        %v620 = vshrl.u32 %v619, 7
        %v621 = vsub.s32 0, %v620
        %v622 = vrot.slane %v614, %v621
        %v625 = vmul.f32 %v618, %v591
        %v626 = vmul.f32 %v622, %v591
        %v627 = vadd.f32 %v586, %v625
        %v628 = vadd.f32 %v587, %v626
        %s629 = scalar_lea.vmem %s210, 18 [#allocation2]
        %v630 = vld [vmem:[%s629] sm:$0x3]
        %s631 = scalar_lea.vmem %s219, 72 [#allocation5]
        %v632 = vld [vmem:[%s631] sm:$0xff]
        %v635 = vunpack.c.l.s4 1966171168
        %v636 = vunpack.c.0.s8 %v635
        %v637 = vlaneseq
        %v638 = vshrl.u32 %v637, 7
        %v639 = vsub.s32 %v636, %v638
        %v640 = vrot.slane %v630, %v639
        %v641 = vcombine.high %v640, %v640
        %v643 = vunpack.c.l.s4 1966171168
        %v644 = vunpack.c.0.s8 %v643
        %v645 = vlaneseq
        %v646 = vshrl.u32 %v645, 7
        %v647 = vsub.s32 %v644, %v646
        %v648 = vrot.slane %v640, %v647
        %v650 = vunpack.c.l.s4 1966171168
        %v651 = vunpack.c.0.s8 %v650
        %v652 = vlaneseq
        %v653 = vshrl.u32 %v652, 7
        %v654 = vsub.s32 %v651, %v653
        %v655 = vrot.slane %v641, %v654
        %v656 = vlaneseq
        %v657 = vshrl.u32 %v656, 7
        %v658 = vsub.s32 0, %v657
        %v659 = vrot.slane %v648, %v658
        %v660 = vlaneseq
        %v661 = vshrl.u32 %v660, 7
        %v662 = vsub.s32 0, %v661
        %v663 = vrot.slane %v655, %v662
        %v666 = vmul.f32 %v659, %v632
        %v667 = vmul.f32 %v663, %v632
        %v668 = vadd.f32 %v627, %v666
        %v669 = vadd.f32 %v628, %v667
        %s670 = scalar_lea.vmem %s210, 20 [#allocation2]
        %v671 = vld [vmem:[%s670] sm:$0x3]
        %s672 = scalar_lea.vmem %s219, 80 [#allocation5]
        %v673 = vld [vmem:[%s672] sm:$0xff]
        %v676 = vunpack.c.l.s4 1966171168
        %v677 = vunpack.c.0.s8 %v676
        %v678 = vlaneseq
        %v679 = vshrl.u32 %v678, 7
        %v680 = vsub.s32 %v677, %v679
        %v681 = vrot.slane %v671, %v680
        %v682 = vcombine.high %v681, %v681
        %v684 = vunpack.c.l.s4 1966171168
        %v685 = vunpack.c.0.s8 %v684
        %v686 = vlaneseq
        %v687 = vshrl.u32 %v686, 7
        %v688 = vsub.s32 %v685, %v687
        %v689 = vrot.slane %v681, %v688
        %v691 = vunpack.c.l.s4 1966171168
        %v692 = vunpack.c.0.s8 %v691
        %v693 = vlaneseq
        %v694 = vshrl.u32 %v693, 7
        %v695 = vsub.s32 %v692, %v694
        %v696 = vrot.slane %v682, %v695
        %v697 = vlaneseq
        %v698 = vshrl.u32 %v697, 7
        %v699 = vsub.s32 0, %v698
        %v700 = vrot.slane %v689, %v699
        %v701 = vlaneseq
        %v702 = vshrl.u32 %v701, 7
        %v703 = vsub.s32 0, %v702
        %v704 = vrot.slane %v696, %v703
        %v707 = vmul.f32 %v700, %v673
        %v708 = vmul.f32 %v704, %v673
        %v709 = vadd.f32 %v668, %v707
        %v710 = vadd.f32 %v669, %v708
        %s711 = scalar_lea.vmem %s210, 22 [#allocation2]
        %v712 = vld [vmem:[%s711] sm:$0x3]
        %s713 = scalar_lea.vmem %s219, 88 [#allocation5]
        %v714 = vld [vmem:[%s713] sm:$0xff]
        %v717 = vunpack.c.l.s4 1966171168
        %v718 = vunpack.c.0.s8 %v717
        %v719 = vlaneseq
        %v720 = vshrl.u32 %v719, 7
        %v721 = vsub.s32 %v718, %v720
        %v722 = vrot.slane %v712, %v721
        %v723 = vcombine.high %v722, %v722
        %v725 = vunpack.c.l.s4 1966171168
        %v726 = vunpack.c.0.s8 %v725
        %v727 = vlaneseq
        %v728 = vshrl.u32 %v727, 7
        %v729 = vsub.s32 %v726, %v728
        %v730 = vrot.slane %v722, %v729
        %v732 = vunpack.c.l.s4 1966171168
        %v733 = vunpack.c.0.s8 %v732
        %v734 = vlaneseq
        %v735 = vshrl.u32 %v734, 7
        %v736 = vsub.s32 %v733, %v735
        %v737 = vrot.slane %v723, %v736
        %v738 = vlaneseq
        %v739 = vshrl.u32 %v738, 7
        %v740 = vsub.s32 0, %v739
        %v741 = vrot.slane %v730, %v740
        %v742 = vlaneseq
        %v743 = vshrl.u32 %v742, 7
        %v744 = vsub.s32 0, %v743
        %v745 = vrot.slane %v737, %v744
        %v748 = vmul.f32 %v741, %v714
        %v749 = vmul.f32 %v745, %v714
        %v750 = vadd.f32 %v709, %v748
        %v751 = vadd.f32 %v710, %v749
        %s752 = scalar_lea.vmem %s210, 24 [#allocation2]
        %v753 = vld [vmem:[%s752] sm:$0x3]
        %s754 = scalar_lea.vmem %s219, 96 [#allocation5]
        %v755 = vld [vmem:[%s754] sm:$0xff]
        %v758 = vunpack.c.l.s4 1966171168
        %v759 = vunpack.c.0.s8 %v758
        %v760 = vlaneseq
        %v761 = vshrl.u32 %v760, 7
        %v762 = vsub.s32 %v759, %v761
        %v763 = vrot.slane %v753, %v762
        %v764 = vcombine.high %v763, %v763
        %v766 = vunpack.c.l.s4 1966171168
        %v767 = vunpack.c.0.s8 %v766
        %v768 = vlaneseq
        %v769 = vshrl.u32 %v768, 7
        %v770 = vsub.s32 %v767, %v769
        %v771 = vrot.slane %v763, %v770
        %v773 = vunpack.c.l.s4 1966171168
        %v774 = vunpack.c.0.s8 %v773
        %v775 = vlaneseq
        %v776 = vshrl.u32 %v775, 7
        %v777 = vsub.s32 %v774, %v776
        %v778 = vrot.slane %v764, %v777
        %v779 = vlaneseq
        %v780 = vshrl.u32 %v779, 7
        %v781 = vsub.s32 0, %v780
        %v782 = vrot.slane %v771, %v781
        %v783 = vlaneseq
        %v784 = vshrl.u32 %v783, 7
        %v785 = vsub.s32 0, %v784
        %v786 = vrot.slane %v778, %v785
        %v789 = vmul.f32 %v782, %v755
        %v790 = vmul.f32 %v786, %v755
        %v791 = vadd.f32 %v750, %v789
        %v792 = vadd.f32 %v751, %v790
        %s793 = scalar_lea.vmem %s210, 26 [#allocation2]
        %v794 = vld [vmem:[%s793] sm:$0x3]
        %s795 = scalar_lea.vmem %s219, 104 [#allocation5]
        %v796 = vld [vmem:[%s795] sm:$0xff]
        %v799 = vunpack.c.l.s4 1966171168
        %v800 = vunpack.c.0.s8 %v799
        %v801 = vlaneseq
        %v802 = vshrl.u32 %v801, 7
        %v803 = vsub.s32 %v800, %v802
        %v804 = vrot.slane %v794, %v803
        %v805 = vcombine.high %v804, %v804
        %v807 = vunpack.c.l.s4 1966171168
        %v808 = vunpack.c.0.s8 %v807
        %v809 = vlaneseq
        %v810 = vshrl.u32 %v809, 7
        %v811 = vsub.s32 %v808, %v810
        %v812 = vrot.slane %v804, %v811
        %v814 = vunpack.c.l.s4 1966171168
        %v815 = vunpack.c.0.s8 %v814
        %v816 = vlaneseq
        %v817 = vshrl.u32 %v816, 7
        %v818 = vsub.s32 %v815, %v817
        %v819 = vrot.slane %v805, %v818
        %v820 = vlaneseq
        %v821 = vshrl.u32 %v820, 7
        %v822 = vsub.s32 0, %v821
        %v823 = vrot.slane %v812, %v822
        %v824 = vlaneseq
        %v825 = vshrl.u32 %v824, 7
        %v826 = vsub.s32 0, %v825
        %v827 = vrot.slane %v819, %v826
        %v830 = vmul.f32 %v823, %v796
        %v831 = vmul.f32 %v827, %v796
        %v832 = vadd.f32 %v791, %v830
        %v833 = vadd.f32 %v792, %v831
        %s834 = scalar_lea.vmem %s210, 28 [#allocation2]
        %v835 = vld [vmem:[%s834] sm:$0x3]
        %s836 = scalar_lea.vmem %s219, 112 [#allocation5]
        %v837 = vld [vmem:[%s836] sm:$0xff]
        %v840 = vunpack.c.l.s4 1966171168
        %v841 = vunpack.c.0.s8 %v840
        %v842 = vlaneseq
        %v843 = vshrl.u32 %v842, 7
        %v844 = vsub.s32 %v841, %v843
        %v845 = vrot.slane %v835, %v844
        %v846 = vcombine.high %v845, %v845
        %v848 = vunpack.c.l.s4 1966171168
        %v849 = vunpack.c.0.s8 %v848
        %v850 = vlaneseq
        %v851 = vshrl.u32 %v850, 7
        %v852 = vsub.s32 %v849, %v851
        %v853 = vrot.slane %v845, %v852
        %v855 = vunpack.c.l.s4 1966171168
        %v856 = vunpack.c.0.s8 %v855
        %v857 = vlaneseq
        %v858 = vshrl.u32 %v857, 7
        %v859 = vsub.s32 %v856, %v858
        %v860 = vrot.slane %v846, %v859
        %v861 = vlaneseq
        %v862 = vshrl.u32 %v861, 7
        %v863 = vsub.s32 0, %v862
        %v864 = vrot.slane %v853, %v863
        %v865 = vlaneseq
        %v866 = vshrl.u32 %v865, 7
        %v867 = vsub.s32 0, %v866
        %v868 = vrot.slane %v860, %v867
        %v871 = vmul.f32 %v864, %v837
        %v872 = vmul.f32 %v868, %v837
        %v873 = vadd.f32 %v832, %v871
        %v874 = vadd.f32 %v833, %v872
        %s875 = scalar_lea.vmem %s210, 30 [#allocation2]
        %v876 = vld [vmem:[%s875] sm:$0x3]
        %s877 = scalar_lea.vmem %s219, 120 [#allocation5]
        %v878 = vld [vmem:[%s877] sm:$0xff]
        %v881 = vunpack.c.l.s4 1966171168
        %v882 = vunpack.c.0.s8 %v881
        %v883 = vlaneseq
        %v884 = vshrl.u32 %v883, 7
        %v885 = vsub.s32 %v882, %v884
        %v886 = vrot.slane %v876, %v885
        %v887 = vcombine.high %v886, %v886
        %v889 = vunpack.c.l.s4 1966171168
        %v890 = vunpack.c.0.s8 %v889
        %v891 = vlaneseq
        %v892 = vshrl.u32 %v891, 7
        %v893 = vsub.s32 %v890, %v892
        %v894 = vrot.slane %v886, %v893
        %v896 = vunpack.c.l.s4 1966171168
        %v897 = vunpack.c.0.s8 %v896
        %v898 = vlaneseq
        %v899 = vshrl.u32 %v898, 7
        %v900 = vsub.s32 %v897, %v899
        %v901 = vrot.slane %v887, %v900
        %v902 = vlaneseq
        %v903 = vshrl.u32 %v902, 7
        %v904 = vsub.s32 0, %v903
        %v905 = vrot.slane %v894, %v904
        %v906 = vlaneseq
        %v907 = vshrl.u32 %v906, 7
        %v908 = vsub.s32 0, %v907
        %v909 = vrot.slane %v901, %v908
        %v912 = vmul.f32 %v905, %v878
        %v913 = vmul.f32 %v909, %v878
        %v914 = vadd.f32 %v873, %v912
        %v915 = vadd.f32 %v874, %v913
        %s916 = scalar_lea.vmem %s210, 32 [#allocation2]
        %v917 = vld [vmem:[%s916] sm:$0x3]
        %s918 = scalar_lea.vmem %s219, 128 [#allocation5]
        %v919 = vld [vmem:[%s918] sm:$0xff]
        %v922 = vunpack.c.l.s4 1966171168
        %v923 = vunpack.c.0.s8 %v922
        %v924 = vlaneseq
        %v925 = vshrl.u32 %v924, 7
        %v926 = vsub.s32 %v923, %v925
        %v927 = vrot.slane %v917, %v926
        %v928 = vcombine.high %v927, %v927
        %v930 = vunpack.c.l.s4 1966171168
        %v931 = vunpack.c.0.s8 %v930
        %v932 = vlaneseq
        %v933 = vshrl.u32 %v932, 7
        %v934 = vsub.s32 %v931, %v933
        %v935 = vrot.slane %v927, %v934
        %v937 = vunpack.c.l.s4 1966171168
        %v938 = vunpack.c.0.s8 %v937
        %v939 = vlaneseq
        %v940 = vshrl.u32 %v939, 7
        %v941 = vsub.s32 %v938, %v940
        %v942 = vrot.slane %v928, %v941
        %v943 = vlaneseq
        %v944 = vshrl.u32 %v943, 7
        %v945 = vsub.s32 0, %v944
        %v946 = vrot.slane %v935, %v945
        %v947 = vlaneseq
        %v948 = vshrl.u32 %v947, 7
        %v949 = vsub.s32 0, %v948
        %v950 = vrot.slane %v942, %v949
        %v953 = vmul.f32 %v946, %v919
        %v954 = vmul.f32 %v950, %v919
        %v955 = vadd.f32 %v914, %v953
        %v956 = vadd.f32 %v915, %v954
        %s957 = scalar_lea.vmem %s210, 34 [#allocation2]
        %v958 = vld [vmem:[%s957] sm:$0x3]
        %s959 = scalar_lea.vmem %s219, 136 [#allocation5]
        %v960 = vld [vmem:[%s959] sm:$0xff]
        %v963 = vunpack.c.l.s4 1966171168
        %v964 = vunpack.c.0.s8 %v963
        %v965 = vlaneseq
        %v966 = vshrl.u32 %v965, 7
        %v967 = vsub.s32 %v964, %v966
        %v968 = vrot.slane %v958, %v967
        %v969 = vcombine.high %v968, %v968
        %v971 = vunpack.c.l.s4 1966171168
        %v972 = vunpack.c.0.s8 %v971
        %v973 = vlaneseq
        %v974 = vshrl.u32 %v973, 7
        %v975 = vsub.s32 %v972, %v974
        %v976 = vrot.slane %v968, %v975
        %v978 = vunpack.c.l.s4 1966171168
        %v979 = vunpack.c.0.s8 %v978
        %v980 = vlaneseq
        %v981 = vshrl.u32 %v980, 7
        %v982 = vsub.s32 %v979, %v981
        %v983 = vrot.slane %v969, %v982
        %v984 = vlaneseq
        %v985 = vshrl.u32 %v984, 7
        %v986 = vsub.s32 0, %v985
        %v987 = vrot.slane %v976, %v986
        %v988 = vlaneseq
        %v989 = vshrl.u32 %v988, 7
        %v990 = vsub.s32 0, %v989
        %v991 = vrot.slane %v983, %v990
        %v994 = vmul.f32 %v987, %v960
        %v995 = vmul.f32 %v991, %v960
        %v996 = vadd.f32 %v955, %v994
        %v997 = vadd.f32 %v956, %v995
        %s998 = scalar_lea.vmem %s210, 36 [#allocation2]
        %v999 = vld [vmem:[%s998] sm:$0x3]
        %s1000 = scalar_lea.vmem %s219, 144 [#allocation5]
        %v1001 = vld [vmem:[%s1000] sm:$0xff]
        %v1004 = vunpack.c.l.s4 1966171168
        %v1005 = vunpack.c.0.s8 %v1004
        %v1006 = vlaneseq
        %v1007 = vshrl.u32 %v1006, 7
        %v1008 = vsub.s32 %v1005, %v1007
        %v1009 = vrot.slane %v999, %v1008
        %v1010 = vcombine.high %v1009, %v1009
        %v1012 = vunpack.c.l.s4 1966171168
        %v1013 = vunpack.c.0.s8 %v1012
        %v1014 = vlaneseq
        %v1015 = vshrl.u32 %v1014, 7
        %v1016 = vsub.s32 %v1013, %v1015
        %v1017 = vrot.slane %v1009, %v1016
        %v1019 = vunpack.c.l.s4 1966171168
        %v1020 = vunpack.c.0.s8 %v1019
        %v1021 = vlaneseq
        %v1022 = vshrl.u32 %v1021, 7
        %v1023 = vsub.s32 %v1020, %v1022
        %v1024 = vrot.slane %v1010, %v1023
        %v1025 = vlaneseq
        %v1026 = vshrl.u32 %v1025, 7
        %v1027 = vsub.s32 0, %v1026
        %v1028 = vrot.slane %v1017, %v1027
        %v1029 = vlaneseq
        %v1030 = vshrl.u32 %v1029, 7
        %v1031 = vsub.s32 0, %v1030
        %v1032 = vrot.slane %v1024, %v1031
        %v1035 = vmul.f32 %v1028, %v1001
        %v1036 = vmul.f32 %v1032, %v1001
        %v1037 = vadd.f32 %v996, %v1035
        %v1038 = vadd.f32 %v997, %v1036
        %s1039 = scalar_lea.vmem %s210, 38 [#allocation2]
        %v1040 = vld [vmem:[%s1039] sm:$0x3]
        %s1041 = scalar_lea.vmem %s219, 152 [#allocation5]
        %v1042 = vld [vmem:[%s1041] sm:$0xff]
        %v1045 = vunpack.c.l.s4 1966171168
        %v1046 = vunpack.c.0.s8 %v1045
        %v1047 = vlaneseq
        %v1048 = vshrl.u32 %v1047, 7
        %v1049 = vsub.s32 %v1046, %v1048
        %v1050 = vrot.slane %v1040, %v1049
        %v1051 = vcombine.high %v1050, %v1050
        %v1053 = vunpack.c.l.s4 1966171168
        %v1054 = vunpack.c.0.s8 %v1053
        %v1055 = vlaneseq
        %v1056 = vshrl.u32 %v1055, 7
        %v1057 = vsub.s32 %v1054, %v1056
        %v1058 = vrot.slane %v1050, %v1057
        %v1060 = vunpack.c.l.s4 1966171168
        %v1061 = vunpack.c.0.s8 %v1060
        %v1062 = vlaneseq
        %v1063 = vshrl.u32 %v1062, 7
        %v1064 = vsub.s32 %v1061, %v1063
        %v1065 = vrot.slane %v1051, %v1064
        %v1066 = vlaneseq
        %v1067 = vshrl.u32 %v1066, 7
        %v1068 = vsub.s32 0, %v1067
        %v1069 = vrot.slane %v1058, %v1068
        %v1070 = vlaneseq
        %v1071 = vshrl.u32 %v1070, 7
        %v1072 = vsub.s32 0, %v1071
        %v1073 = vrot.slane %v1065, %v1072
        %v1076 = vmul.f32 %v1069, %v1042
        %v1077 = vmul.f32 %v1073, %v1042
        %v1078 = vadd.f32 %v1037, %v1076
        %v1079 = vadd.f32 %v1038, %v1077
        %s1080 = scalar_lea.vmem %s210, 40 [#allocation2]
        %v1081 = vld [vmem:[%s1080] sm:$0x3]
        %s1082 = scalar_lea.vmem %s219, 160 [#allocation5]
        %v1083 = vld [vmem:[%s1082] sm:$0xff]
        %v1086 = vunpack.c.l.s4 1966171168
        %v1087 = vunpack.c.0.s8 %v1086
        %v1088 = vlaneseq
        %v1089 = vshrl.u32 %v1088, 7
        %v1090 = vsub.s32 %v1087, %v1089
        %v1091 = vrot.slane %v1081, %v1090
        %v1092 = vcombine.high %v1091, %v1091
        %v1094 = vunpack.c.l.s4 1966171168
        %v1095 = vunpack.c.0.s8 %v1094
        %v1096 = vlaneseq
        %v1097 = vshrl.u32 %v1096, 7
        %v1098 = vsub.s32 %v1095, %v1097
        %v1099 = vrot.slane %v1091, %v1098
        %v1101 = vunpack.c.l.s4 1966171168
        %v1102 = vunpack.c.0.s8 %v1101
        %v1103 = vlaneseq
        %v1104 = vshrl.u32 %v1103, 7
        %v1105 = vsub.s32 %v1102, %v1104
        %v1106 = vrot.slane %v1092, %v1105
        %v1107 = vlaneseq
        %v1108 = vshrl.u32 %v1107, 7
        %v1109 = vsub.s32 0, %v1108
        %v1110 = vrot.slane %v1099, %v1109
        %v1111 = vlaneseq
        %v1112 = vshrl.u32 %v1111, 7
        %v1113 = vsub.s32 0, %v1112
        %v1114 = vrot.slane %v1106, %v1113
        %v1117 = vmul.f32 %v1110, %v1083
        %v1118 = vmul.f32 %v1114, %v1083
        %v1119 = vadd.f32 %v1078, %v1117
        %v1120 = vadd.f32 %v1079, %v1118
        %s1121 = scalar_lea.vmem %s210, 42 [#allocation2]
        %v1122 = vld [vmem:[%s1121] sm:$0x3]
        %s1123 = scalar_lea.vmem %s219, 168 [#allocation5]
        %v1124 = vld [vmem:[%s1123] sm:$0xff]
        %v1127 = vunpack.c.l.s4 1966171168
        %v1128 = vunpack.c.0.s8 %v1127
        %v1129 = vlaneseq
        %v1130 = vshrl.u32 %v1129, 7
        %v1131 = vsub.s32 %v1128, %v1130
        %v1132 = vrot.slane %v1122, %v1131
        %v1133 = vcombine.high %v1132, %v1132
        %v1135 = vunpack.c.l.s4 1966171168
        %v1136 = vunpack.c.0.s8 %v1135
        %v1137 = vlaneseq
        %v1138 = vshrl.u32 %v1137, 7
        %v1139 = vsub.s32 %v1136, %v1138
        %v1140 = vrot.slane %v1132, %v1139
        %v1142 = vunpack.c.l.s4 1966171168
        %v1143 = vunpack.c.0.s8 %v1142
        %v1144 = vlaneseq
        %v1145 = vshrl.u32 %v1144, 7
        %v1146 = vsub.s32 %v1143, %v1145
        %v1147 = vrot.slane %v1133, %v1146
        %v1148 = vlaneseq
        %v1149 = vshrl.u32 %v1148, 7
        %v1150 = vsub.s32 0, %v1149
        %v1151 = vrot.slane %v1140, %v1150
        %v1152 = vlaneseq
        %v1153 = vshrl.u32 %v1152, 7
        %v1154 = vsub.s32 0, %v1153
        %v1155 = vrot.slane %v1147, %v1154
        %v1158 = vmul.f32 %v1151, %v1124
        %v1159 = vmul.f32 %v1155, %v1124
        %v1160 = vadd.f32 %v1119, %v1158
        %v1161 = vadd.f32 %v1120, %v1159
        %s1162 = scalar_lea.vmem %s210, 44 [#allocation2]
        %v1163 = vld [vmem:[%s1162] sm:$0x3]
        %s1164 = scalar_lea.vmem %s219, 176 [#allocation5]
        %v1165 = vld [vmem:[%s1164] sm:$0xff]
        %v1168 = vunpack.c.l.s4 1966171168
        %v1169 = vunpack.c.0.s8 %v1168
        %v1170 = vlaneseq
        %v1171 = vshrl.u32 %v1170, 7
        %v1172 = vsub.s32 %v1169, %v1171
        %v1173 = vrot.slane %v1163, %v1172
        %v1174 = vcombine.high %v1173, %v1173
        %v1176 = vunpack.c.l.s4 1966171168
        %v1177 = vunpack.c.0.s8 %v1176
        %v1178 = vlaneseq
        %v1179 = vshrl.u32 %v1178, 7
        %v1180 = vsub.s32 %v1177, %v1179
        %v1181 = vrot.slane %v1173, %v1180
        %v1183 = vunpack.c.l.s4 1966171168
        %v1184 = vunpack.c.0.s8 %v1183
        %v1185 = vlaneseq
        %v1186 = vshrl.u32 %v1185, 7
        %v1187 = vsub.s32 %v1184, %v1186
        %v1188 = vrot.slane %v1174, %v1187
        %v1189 = vlaneseq
        %v1190 = vshrl.u32 %v1189, 7
        %v1191 = vsub.s32 0, %v1190
        %v1192 = vrot.slane %v1181, %v1191
        %v1193 = vlaneseq
        %v1194 = vshrl.u32 %v1193, 7
        %v1195 = vsub.s32 0, %v1194
        %v1196 = vrot.slane %v1188, %v1195
        %v1199 = vmul.f32 %v1192, %v1165
        %v1200 = vmul.f32 %v1196, %v1165
        %v1201 = vadd.f32 %v1160, %v1199
        %v1202 = vadd.f32 %v1161, %v1200
        %s1203 = scalar_lea.vmem %s210, 46 [#allocation2]
        %v1204 = vld [vmem:[%s1203] sm:$0x3]
        %s1205 = scalar_lea.vmem %s219, 184 [#allocation5]
        %v1206 = vld [vmem:[%s1205] sm:$0xff]
        %v1209 = vunpack.c.l.s4 1966171168
        %v1210 = vunpack.c.0.s8 %v1209
        %v1211 = vlaneseq
        %v1212 = vshrl.u32 %v1211, 7
        %v1213 = vsub.s32 %v1210, %v1212
        %v1214 = vrot.slane %v1204, %v1213
        %v1215 = vcombine.high %v1214, %v1214
        %v1217 = vunpack.c.l.s4 1966171168
        %v1218 = vunpack.c.0.s8 %v1217
        %v1219 = vlaneseq
        %v1220 = vshrl.u32 %v1219, 7
        %v1221 = vsub.s32 %v1218, %v1220
        %v1222 = vrot.slane %v1214, %v1221
        %v1224 = vunpack.c.l.s4 1966171168
        %v1225 = vunpack.c.0.s8 %v1224
        %v1226 = vlaneseq
        %v1227 = vshrl.u32 %v1226, 7
        %v1228 = vsub.s32 %v1225, %v1227
        %v1229 = vrot.slane %v1215, %v1228
        %v1230 = vlaneseq
        %v1231 = vshrl.u32 %v1230, 7
        %v1232 = vsub.s32 0, %v1231
        %v1233 = vrot.slane %v1222, %v1232
        %v1234 = vlaneseq
        %v1235 = vshrl.u32 %v1234, 7
        %v1236 = vsub.s32 0, %v1235
        %v1237 = vrot.slane %v1229, %v1236
        %v1240 = vmul.f32 %v1233, %v1206
        %v1241 = vmul.f32 %v1237, %v1206
        %v1242 = vadd.f32 %v1201, %v1240
        %v1243 = vadd.f32 %v1202, %v1241
        %s1244 = scalar_lea.vmem %s210, 48 [#allocation2]
        %v1245 = vld [vmem:[%s1244] sm:$0x3]
        %s1246 = scalar_lea.vmem %s219, 192 [#allocation5]
        %v1247 = vld [vmem:[%s1246] sm:$0xff]
        %v1250 = vunpack.c.l.s4 1966171168
        %v1251 = vunpack.c.0.s8 %v1250
        %v1252 = vlaneseq
        %v1253 = vshrl.u32 %v1252, 7
        %v1254 = vsub.s32 %v1251, %v1253
        %v1255 = vrot.slane %v1245, %v1254
        %v1256 = vcombine.high %v1255, %v1255
        %v1258 = vunpack.c.l.s4 1966171168
        %v1259 = vunpack.c.0.s8 %v1258
        %v1260 = vlaneseq
        %v1261 = vshrl.u32 %v1260, 7
        %v1262 = vsub.s32 %v1259, %v1261
        %v1263 = vrot.slane %v1255, %v1262
        %v1265 = vunpack.c.l.s4 1966171168
        %v1266 = vunpack.c.0.s8 %v1265
        %v1267 = vlaneseq
        %v1268 = vshrl.u32 %v1267, 7
        %v1269 = vsub.s32 %v1266, %v1268
        %v1270 = vrot.slane %v1256, %v1269
        %v1271 = vlaneseq
        %v1272 = vshrl.u32 %v1271, 7
        %v1273 = vsub.s32 0, %v1272
        %v1274 = vrot.slane %v1263, %v1273
        %v1275 = vlaneseq
        %v1276 = vshrl.u32 %v1275, 7
        %v1277 = vsub.s32 0, %v1276
        %v1278 = vrot.slane %v1270, %v1277
        %v1281 = vmul.f32 %v1274, %v1247
        %v1282 = vmul.f32 %v1278, %v1247
        %v1283 = vadd.f32 %v1242, %v1281
        %v1284 = vadd.f32 %v1243, %v1282
        %s1285 = scalar_lea.vmem %s210, 50 [#allocation2]
        %v1286 = vld [vmem:[%s1285] sm:$0x3]
        %s1287 = scalar_lea.vmem %s219, 200 [#allocation5]
        %v1288 = vld [vmem:[%s1287] sm:$0xff]
        %v1291 = vunpack.c.l.s4 1966171168
        %v1292 = vunpack.c.0.s8 %v1291
        %v1293 = vlaneseq
        %v1294 = vshrl.u32 %v1293, 7
        %v1295 = vsub.s32 %v1292, %v1294
        %v1296 = vrot.slane %v1286, %v1295
        %v1297 = vcombine.high %v1296, %v1296
        %v1299 = vunpack.c.l.s4 1966171168
        %v1300 = vunpack.c.0.s8 %v1299
        %v1301 = vlaneseq
        %v1302 = vshrl.u32 %v1301, 7
        %v1303 = vsub.s32 %v1300, %v1302
        %v1304 = vrot.slane %v1296, %v1303
        %v1306 = vunpack.c.l.s4 1966171168
        %v1307 = vunpack.c.0.s8 %v1306
        %v1308 = vlaneseq
        %v1309 = vshrl.u32 %v1308, 7
        %v1310 = vsub.s32 %v1307, %v1309
        %v1311 = vrot.slane %v1297, %v1310
        %v1312 = vlaneseq
        %v1313 = vshrl.u32 %v1312, 7
        %v1314 = vsub.s32 0, %v1313
        %v1315 = vrot.slane %v1304, %v1314
        %v1316 = vlaneseq
        %v1317 = vshrl.u32 %v1316, 7
        %v1318 = vsub.s32 0, %v1317
        %v1319 = vrot.slane %v1311, %v1318
        %v1322 = vmul.f32 %v1315, %v1288
        %v1323 = vmul.f32 %v1319, %v1288
        %v1324 = vadd.f32 %v1283, %v1322
        %v1325 = vadd.f32 %v1284, %v1323
        %s1326 = scalar_lea.vmem %s210, 52 [#allocation2]
        %v1327 = vld [vmem:[%s1326] sm:$0x3]
        %s1328 = scalar_lea.vmem %s219, 208 [#allocation5]
        %v1329 = vld [vmem:[%s1328] sm:$0xff]
        %v1332 = vunpack.c.l.s4 1966171168
        %v1333 = vunpack.c.0.s8 %v1332
        %v1334 = vlaneseq
        %v1335 = vshrl.u32 %v1334, 7
        %v1336 = vsub.s32 %v1333, %v1335
        %v1337 = vrot.slane %v1327, %v1336
        %v1338 = vcombine.high %v1337, %v1337
        %v1340 = vunpack.c.l.s4 1966171168
        %v1341 = vunpack.c.0.s8 %v1340
        %v1342 = vlaneseq
        %v1343 = vshrl.u32 %v1342, 7
        %v1344 = vsub.s32 %v1341, %v1343
        %v1345 = vrot.slane %v1337, %v1344
        %v1347 = vunpack.c.l.s4 1966171168
        %v1348 = vunpack.c.0.s8 %v1347
        %v1349 = vlaneseq
        %v1350 = vshrl.u32 %v1349, 7
        %v1351 = vsub.s32 %v1348, %v1350
        %v1352 = vrot.slane %v1338, %v1351
        %v1353 = vlaneseq
        %v1354 = vshrl.u32 %v1353, 7
        %v1355 = vsub.s32 0, %v1354
        %v1356 = vrot.slane %v1345, %v1355
        %v1357 = vlaneseq
        %v1358 = vshrl.u32 %v1357, 7
        %v1359 = vsub.s32 0, %v1358
        %v1360 = vrot.slane %v1352, %v1359
        %v1363 = vmul.f32 %v1356, %v1329
        %v1364 = vmul.f32 %v1360, %v1329
        %v1365 = vadd.f32 %v1324, %v1363
        %v1366 = vadd.f32 %v1325, %v1364
        %s1367 = scalar_lea.vmem %s210, 54 [#allocation2]
        %v1368 = vld [vmem:[%s1367] sm:$0x3]
        %s1369 = scalar_lea.vmem %s219, 216 [#allocation5]
        %v1370 = vld [vmem:[%s1369] sm:$0xff]
        %v1373 = vunpack.c.l.s4 1966171168
        %v1374 = vunpack.c.0.s8 %v1373
        %v1375 = vlaneseq
        %v1376 = vshrl.u32 %v1375, 7
        %v1377 = vsub.s32 %v1374, %v1376
        %v1378 = vrot.slane %v1368, %v1377
        %v1379 = vcombine.high %v1378, %v1378
        %v1381 = vunpack.c.l.s4 1966171168
        %v1382 = vunpack.c.0.s8 %v1381
        %v1383 = vlaneseq
        %v1384 = vshrl.u32 %v1383, 7
        %v1385 = vsub.s32 %v1382, %v1384
        %v1386 = vrot.slane %v1378, %v1385
        %v1388 = vunpack.c.l.s4 1966171168
        %v1389 = vunpack.c.0.s8 %v1388
        %v1390 = vlaneseq
        %v1391 = vshrl.u32 %v1390, 7
        %v1392 = vsub.s32 %v1389, %v1391
        %v1393 = vrot.slane %v1379, %v1392
        %v1394 = vlaneseq
        %v1395 = vshrl.u32 %v1394, 7
        %v1396 = vsub.s32 0, %v1395
        %v1397 = vrot.slane %v1386, %v1396
        %v1398 = vlaneseq
        %v1399 = vshrl.u32 %v1398, 7
        %v1400 = vsub.s32 0, %v1399
        %v1401 = vrot.slane %v1393, %v1400
        %v1404 = vmul.f32 %v1397, %v1370
        %v1405 = vmul.f32 %v1401, %v1370
        %v1406 = vadd.f32 %v1365, %v1404
        %v1407 = vadd.f32 %v1366, %v1405
        %s1408 = scalar_lea.vmem %s210, 56 [#allocation2]
        %v1409 = vld [vmem:[%s1408] sm:$0x3]
        %s1410 = scalar_lea.vmem %s219, 224 [#allocation5]
        %v1411 = vld [vmem:[%s1410] sm:$0xff]
        %v1414 = vunpack.c.l.s4 1966171168
        %v1415 = vunpack.c.0.s8 %v1414
        %v1416 = vlaneseq
        %v1417 = vshrl.u32 %v1416, 7
        %v1418 = vsub.s32 %v1415, %v1417
        %v1419 = vrot.slane %v1409, %v1418
        %v1420 = vcombine.high %v1419, %v1419
        %v1422 = vunpack.c.l.s4 1966171168
        %v1423 = vunpack.c.0.s8 %v1422
        %v1424 = vlaneseq
        %v1425 = vshrl.u32 %v1424, 7
        %v1426 = vsub.s32 %v1423, %v1425
        %v1427 = vrot.slane %v1419, %v1426
        %v1429 = vunpack.c.l.s4 1966171168
        %v1430 = vunpack.c.0.s8 %v1429
        %v1431 = vlaneseq
        %v1432 = vshrl.u32 %v1431, 7
        %v1433 = vsub.s32 %v1430, %v1432
        %v1434 = vrot.slane %v1420, %v1433
        %v1435 = vlaneseq
        %v1436 = vshrl.u32 %v1435, 7
        %v1437 = vsub.s32 0, %v1436
        %v1438 = vrot.slane %v1427, %v1437
        %v1439 = vlaneseq
        %v1440 = vshrl.u32 %v1439, 7
        %v1441 = vsub.s32 0, %v1440
        %v1442 = vrot.slane %v1434, %v1441
        %v1445 = vmul.f32 %v1438, %v1411
        %v1446 = vmul.f32 %v1442, %v1411
        %v1447 = vadd.f32 %v1406, %v1445
        %v1448 = vadd.f32 %v1407, %v1446
        %s1449 = scalar_lea.vmem %s210, 58 [#allocation2]
        %v1450 = vld [vmem:[%s1449] sm:$0x3]
        %s1451 = scalar_lea.vmem %s219, 232 [#allocation5]
        %v1452 = vld [vmem:[%s1451] sm:$0xff]
        %v1455 = vunpack.c.l.s4 1966171168
        %v1456 = vunpack.c.0.s8 %v1455
        %v1457 = vlaneseq
        %v1458 = vshrl.u32 %v1457, 7
        %v1459 = vsub.s32 %v1456, %v1458
        %v1460 = vrot.slane %v1450, %v1459
        %v1461 = vcombine.high %v1460, %v1460
        %v1463 = vunpack.c.l.s4 1966171168
        %v1464 = vunpack.c.0.s8 %v1463
        %v1465 = vlaneseq
        %v1466 = vshrl.u32 %v1465, 7
        %v1467 = vsub.s32 %v1464, %v1466
        %v1468 = vrot.slane %v1460, %v1467
        %v1470 = vunpack.c.l.s4 1966171168
        %v1471 = vunpack.c.0.s8 %v1470
        %v1472 = vlaneseq
        %v1473 = vshrl.u32 %v1472, 7
        %v1474 = vsub.s32 %v1471, %v1473
        %v1475 = vrot.slane %v1461, %v1474
        %v1476 = vlaneseq
        %v1477 = vshrl.u32 %v1476, 7
        %v1478 = vsub.s32 0, %v1477
        %v1479 = vrot.slane %v1468, %v1478
        %v1480 = vlaneseq
        %v1481 = vshrl.u32 %v1480, 7
        %v1482 = vsub.s32 0, %v1481
        %v1483 = vrot.slane %v1475, %v1482
        %v1486 = vmul.f32 %v1479, %v1452
        %v1487 = vmul.f32 %v1483, %v1452
        %v1488 = vadd.f32 %v1447, %v1486
        %v1489 = vadd.f32 %v1448, %v1487
        %s1490 = scalar_lea.vmem %s210, 60 [#allocation2]
        %v1491 = vld [vmem:[%s1490] sm:$0x3]
        %s1492 = scalar_lea.vmem %s219, 240 [#allocation5]
        %v1493 = vld [vmem:[%s1492] sm:$0xff]
        %v1496 = vunpack.c.l.s4 1966171168
        %v1497 = vunpack.c.0.s8 %v1496
        %v1498 = vlaneseq
        %v1499 = vshrl.u32 %v1498, 7
        %v1500 = vsub.s32 %v1497, %v1499
        %v1501 = vrot.slane %v1491, %v1500
        %v1502 = vcombine.high %v1501, %v1501
        %v1504 = vunpack.c.l.s4 1966171168
        %v1505 = vunpack.c.0.s8 %v1504
        %v1506 = vlaneseq
        %v1507 = vshrl.u32 %v1506, 7
        %v1508 = vsub.s32 %v1505, %v1507
        %v1509 = vrot.slane %v1501, %v1508
        %v1511 = vunpack.c.l.s4 1966171168
        %v1512 = vunpack.c.0.s8 %v1511
        %v1513 = vlaneseq
        %v1514 = vshrl.u32 %v1513, 7
        %v1515 = vsub.s32 %v1512, %v1514
        %v1516 = vrot.slane %v1502, %v1515
        %v1517 = vlaneseq
        %v1518 = vshrl.u32 %v1517, 7
        %v1519 = vsub.s32 0, %v1518
        %v1520 = vrot.slane %v1509, %v1519
        %v1521 = vlaneseq
        %v1522 = vshrl.u32 %v1521, 7
        %v1523 = vsub.s32 0, %v1522
        %v1524 = vrot.slane %v1516, %v1523
        %v1527 = vmul.f32 %v1520, %v1493
        %v1528 = vmul.f32 %v1524, %v1493
        %v1529 = vadd.f32 %v1488, %v1527
        %v1530 = vadd.f32 %v1489, %v1528
        %s1531 = scalar_lea.vmem %s210, 62 [#allocation2]
        %v1532 = vld [vmem:[%s1531] sm:$0x3]
        %s1533 = scalar_lea.vmem %s219, 248 [#allocation5]
        %v1534 = vld [vmem:[%s1533] sm:$0xff]
        %v1537 = vunpack.c.l.s4 1966171168
        %v1538 = vunpack.c.0.s8 %v1537
        %v1539 = vlaneseq
        %v1540 = vshrl.u32 %v1539, 7
        %v1541 = vsub.s32 %v1538, %v1540
        %v1542 = vrot.slane %v1532, %v1541
        %v1543 = vcombine.high %v1542, %v1542
        %v1545 = vunpack.c.l.s4 1966171168
        %v1546 = vunpack.c.0.s8 %v1545
        %v1547 = vlaneseq
        %v1548 = vshrl.u32 %v1547, 7
        %v1549 = vsub.s32 %v1546, %v1548
        %v1550 = vrot.slane %v1542, %v1549
        %v1552 = vunpack.c.l.s4 1966171168
        %v1553 = vunpack.c.0.s8 %v1552
        %v1554 = vlaneseq
        %v1555 = vshrl.u32 %v1554, 7
        %v1556 = vsub.s32 %v1553, %v1555
        %v1557 = vrot.slane %v1543, %v1556
        %v1558 = vlaneseq
        %v1559 = vshrl.u32 %v1558, 7
        %v1560 = vsub.s32 0, %v1559
        %v1561 = vrot.slane %v1550, %v1560
        %v1562 = vlaneseq
        %v1563 = vshrl.u32 %v1562, 7
        %v1564 = vsub.s32 0, %v1563
        %v1565 = vrot.slane %v1557, %v1564
        %v1568 = vmul.f32 %v1561, %v1534
        %v1569 = vmul.f32 %v1565, %v1534
        %v1570 = vadd.f32 %v1529, %v1568
        %v1571 = vadd.f32 %v1530, %v1569
        %s1572 = scalar_lea.vmem %s210, 64 [#allocation2]
        %v1573 = vld [vmem:[%s1572] sm:$0x3]
        %s1574 = scalar_lea.vmem %s219, 256 [#allocation5]
        %v1575 = vld [vmem:[%s1574] sm:$0xff]
        %v1578 = vunpack.c.l.s4 1966171168
        %v1579 = vunpack.c.0.s8 %v1578
        %v1580 = vlaneseq
        %v1581 = vshrl.u32 %v1580, 7
        %v1582 = vsub.s32 %v1579, %v1581
        %v1583 = vrot.slane %v1573, %v1582
        %v1584 = vcombine.high %v1583, %v1583
        %v1586 = vunpack.c.l.s4 1966171168
        %v1587 = vunpack.c.0.s8 %v1586
        %v1588 = vlaneseq
        %v1589 = vshrl.u32 %v1588, 7
        %v1590 = vsub.s32 %v1587, %v1589
        %v1591 = vrot.slane %v1583, %v1590
        %v1593 = vunpack.c.l.s4 1966171168
        %v1594 = vunpack.c.0.s8 %v1593
        %v1595 = vlaneseq
        %v1596 = vshrl.u32 %v1595, 7
        %v1597 = vsub.s32 %v1594, %v1596
        %v1598 = vrot.slane %v1584, %v1597
        %v1599 = vlaneseq
        %v1600 = vshrl.u32 %v1599, 7
        %v1601 = vsub.s32 0, %v1600
        %v1602 = vrot.slane %v1591, %v1601
        %v1603 = vlaneseq
        %v1604 = vshrl.u32 %v1603, 7
        %v1605 = vsub.s32 0, %v1604
        %v1606 = vrot.slane %v1598, %v1605
        %v1609 = vmul.f32 %v1602, %v1575
        %v1610 = vmul.f32 %v1606, %v1575
        %v1611 = vadd.f32 %v1570, %v1609
        %v1612 = vadd.f32 %v1571, %v1610
        %s1613 = scalar_lea.vmem %s210, 66 [#allocation2]
        %v1614 = vld [vmem:[%s1613] sm:$0x3]
        %s1615 = scalar_lea.vmem %s219, 264 [#allocation5]
        %v1616 = vld [vmem:[%s1615] sm:$0xff]
        %v1619 = vunpack.c.l.s4 1966171168
        %v1620 = vunpack.c.0.s8 %v1619
        %v1621 = vlaneseq
        %v1622 = vshrl.u32 %v1621, 7
        %v1623 = vsub.s32 %v1620, %v1622
        %v1624 = vrot.slane %v1614, %v1623
        %v1625 = vcombine.high %v1624, %v1624
        %v1627 = vunpack.c.l.s4 1966171168
        %v1628 = vunpack.c.0.s8 %v1627
        %v1629 = vlaneseq
        %v1630 = vshrl.u32 %v1629, 7
        %v1631 = vsub.s32 %v1628, %v1630
        %v1632 = vrot.slane %v1624, %v1631
        %v1634 = vunpack.c.l.s4 1966171168
        %v1635 = vunpack.c.0.s8 %v1634
        %v1636 = vlaneseq
        %v1637 = vshrl.u32 %v1636, 7
        %v1638 = vsub.s32 %v1635, %v1637
        %v1639 = vrot.slane %v1625, %v1638
        %v1640 = vlaneseq
        %v1641 = vshrl.u32 %v1640, 7
        %v1642 = vsub.s32 0, %v1641
        %v1643 = vrot.slane %v1632, %v1642
        %v1644 = vlaneseq
        %v1645 = vshrl.u32 %v1644, 7
        %v1646 = vsub.s32 0, %v1645
        %v1647 = vrot.slane %v1639, %v1646
        %v1650 = vmul.f32 %v1643, %v1616
        %v1651 = vmul.f32 %v1647, %v1616
        %v1652 = vadd.f32 %v1611, %v1650
        %v1653 = vadd.f32 %v1612, %v1651
        %s1654 = scalar_lea.vmem %s210, 68 [#allocation2]
        %v1655 = vld [vmem:[%s1654] sm:$0x3]
        %s1656 = scalar_lea.vmem %s219, 272 [#allocation5]
        %v1657 = vld [vmem:[%s1656] sm:$0xff]
        %v1660 = vunpack.c.l.s4 1966171168
        %v1661 = vunpack.c.0.s8 %v1660
        %v1662 = vlaneseq
        %v1663 = vshrl.u32 %v1662, 7
        %v1664 = vsub.s32 %v1661, %v1663
        %v1665 = vrot.slane %v1655, %v1664
        %v1666 = vcombine.high %v1665, %v1665
        %v1668 = vunpack.c.l.s4 1966171168
        %v1669 = vunpack.c.0.s8 %v1668
        %v1670 = vlaneseq
        %v1671 = vshrl.u32 %v1670, 7
        %v1672 = vsub.s32 %v1669, %v1671
        %v1673 = vrot.slane %v1665, %v1672
        %v1675 = vunpack.c.l.s4 1966171168
        %v1676 = vunpack.c.0.s8 %v1675
        %v1677 = vlaneseq
        %v1678 = vshrl.u32 %v1677, 7
        %v1679 = vsub.s32 %v1676, %v1678
        %v1680 = vrot.slane %v1666, %v1679
        %v1681 = vlaneseq
        %v1682 = vshrl.u32 %v1681, 7
        %v1683 = vsub.s32 0, %v1682
        %v1684 = vrot.slane %v1673, %v1683
        %v1685 = vlaneseq
        %v1686 = vshrl.u32 %v1685, 7
        %v1687 = vsub.s32 0, %v1686
        %v1688 = vrot.slane %v1680, %v1687
        %v1691 = vmul.f32 %v1684, %v1657
        %v1692 = vmul.f32 %v1688, %v1657
        %v1693 = vadd.f32 %v1652, %v1691
        %v1694 = vadd.f32 %v1653, %v1692
        %s1695 = scalar_lea.vmem %s210, 70 [#allocation2]
        %v1696 = vld [vmem:[%s1695] sm:$0x3]
        %s1697 = scalar_lea.vmem %s219, 280 [#allocation5]
        %v1698 = vld [vmem:[%s1697] sm:$0xff]
        %v1701 = vunpack.c.l.s4 1966171168
        %v1702 = vunpack.c.0.s8 %v1701
        %v1703 = vlaneseq
        %v1704 = vshrl.u32 %v1703, 7
        %v1705 = vsub.s32 %v1702, %v1704
        %v1706 = vrot.slane %v1696, %v1705
        %v1707 = vcombine.high %v1706, %v1706
        %v1709 = vunpack.c.l.s4 1966171168
        %v1710 = vunpack.c.0.s8 %v1709
        %v1711 = vlaneseq
        %v1712 = vshrl.u32 %v1711, 7
        %v1713 = vsub.s32 %v1710, %v1712
        %v1714 = vrot.slane %v1706, %v1713
        %v1716 = vunpack.c.l.s4 1966171168
        %v1717 = vunpack.c.0.s8 %v1716
        %v1718 = vlaneseq
        %v1719 = vshrl.u32 %v1718, 7
        %v1720 = vsub.s32 %v1717, %v1719
        %v1721 = vrot.slane %v1707, %v1720
        %v1722 = vlaneseq
        %v1723 = vshrl.u32 %v1722, 7
        %v1724 = vsub.s32 0, %v1723
        %v1725 = vrot.slane %v1714, %v1724
        %v1726 = vlaneseq
        %v1727 = vshrl.u32 %v1726, 7
        %v1728 = vsub.s32 0, %v1727
        %v1729 = vrot.slane %v1721, %v1728
        %v1732 = vmul.f32 %v1725, %v1698
        %v1733 = vmul.f32 %v1729, %v1698
        %v1734 = vadd.f32 %v1693, %v1732
        %v1735 = vadd.f32 %v1694, %v1733
        %1736 = vst [vmem:[%s260] sm:$0xff] %v1734
        %1737 = vst [vmem:[%s260 + $0x8] sm:$0xff] %v1735
        %s1738 = sand.u32 %s109, 1
        %s1739 = scalar_lea.sflag [#allocation4], %s1738
        %s1740 = sand.u32 %s109, 1
        %s1741 = smul.addr %s1740, 16
        %s1742 = scalar_lea.vmem [#allocation8], %s1741
        // Predicated region
        $region45: #{tpu_custom_call.1} parent=31 // pred_check
          %p1743 = pneg %p119
        $region46: #{tpu_custom_call.1} parent=31 // pred_check_branch
          %1745 = sbr.rel (%p1743) target = $region48
        $region47: #{tpu_custom_call.1} parent=31 // pred_region
          %s1747 = ssub.s32 256, 256
          %1748 = vsyncadd %s1739, %s1747
          %s1749 = smul.addr %s23, 128
          %s1750 = scalar_lea.hbm %s3, %s1749
          %s1751 = sshll.u32 %s1742, 4
          %s1752 = int_to_ptr.vmem [resolvable:$true] %s1751
          %1757 = dma.vmem_to_hbm [thread:$0]  %s1752, 256, %s1750, %s1739, 128, 256, 8
        $region48: #{tpu_custom_call.1} parent=31 // pred_fallthru
          _
      $region32: #{tpu_custom_call.1} parent=5 // pred_fallthru
        _
      %p1758 = scmp.le.s32.totalorder 2, %s18
      // Predicated region
      $region49: #{tpu_custom_call.1} parent=5 // pred_check
        %p1759 = pneg %p1758
      $region50: #{tpu_custom_call.1} parent=5 // pred_check_branch
        %1761 = sbr.rel (%p1759) target = $region52
      $region51: #{tpu_custom_call.1} parent=5 // pred_region
        %s1762 = ssub.s32 %s18, 2
        // Predicated region
        $region53: #{tpu_custom_call.1} parent=51 // pred_check
          %p1763 = pneg %p125
        $region54: #{tpu_custom_call.1} parent=51 // pred_check_branch
          %1765 = sbr.rel (%p1763) target = $region56
        $region55: #{tpu_custom_call.1} parent=51 // pred_region
          %s1766 = sand.u32 %s110, 1
          %s1767 = scalar_lea.sflag [#allocation4], %s1766
          %s1768 = sand.u32 %s110, 1
          %s1769 = smul.addr %s1768, 16
          %s1770 = scalar_lea.vmem [#allocation8], %s1769
          %1771 = dma.done %s1767, 256
        $region56: #{tpu_custom_call.1} parent=51 // pred_fallthru
          _
      $region52: #{tpu_custom_call.1} parent=5 // pred_fallthru
        _
    $region6: #{tpu_custom_call.1} parent=1 // loop_footer
      %s22 = sadd.s32 1, %s18
    $region7: #{tpu_custom_call.1} parent=1 // loop_footer_branch
      %17 = sbr.rel target = $region3
    $region8: #{tpu_custom_call.1} parent=1 // loop_exit
      _
    %1772 = vsyncpa [#allocation3], 1
    %s1773 = scalar_lea.sflag [#allocation3], 1
    %1774 = vsyncpa %s1773, 1
    %1775 = vsyncpa [#allocation6], 1
    %s1776 = scalar_lea.sflag [#allocation6], 1
    %1777 = vsyncpa %s1776, 1
    %1778 = vsyncpa [#allocation4], 1
    %s1779 = scalar_lea.sflag [#allocation4], 1
    %1780 = vsyncpa %s1779, 1

</llo_original>
